<compile_context>
chip_gen: v7x
topology: tpu7x:2x2x1
jax: 0.10.0
libtpu: 0.0.40
codegen_flags: <defaults>
</compile_context>

<pallas_src>
import jax
import jax.numpy as jnp
from jax.experimental import pallas as pl
from jax.experimental.pallas import tpu as pltpu

KS = 7            # SpatialAttention kernel size (fixed by the module)
PAD = KS // 2     # padding = 3


def _make_kernel(TB, C, H, W, C16):
    HW = H * W

    def kernel(d_ref, e_ref, l_ref, a_ref, w1_ref, w2_ref, o_ref):
        # d/e/l/o refs: (TB, C, H*W) lane-dense blocks
        d = d_ref[...].astype(jnp.float32)
        e = e_ref[...].astype(jnp.float32)
        lv = l_ref[...].astype(jnp.float32)

        # ---- SpatialAttention: channel-wise max of fused product ------------------
        m = jnp.max(d * e * lv, axis=1)                        # (TB, HW)
        m3 = m.reshape(TB, H, W)                               # tiny relayout only

        # 7x7 zero-padded conv: pad columns once, take 7 static shifted slices,
        # stack on the sublane axis, contract against the pre-stacked banded matrix.
        zpad = jnp.zeros((TB, H, PAD), jnp.float32)
        m_pad = jnp.concatenate([zpad, m3, zpad], axis=2)      # (TB, H, W + 2*PAD)
        t_stack = jnp.concatenate(
            [m_pad[:, :, j:j + W] for j in range(KS)], axis=1)  # (TB, KS*H, W)
        a_b = jnp.broadcast_to(a_ref[...], (TB, H, KS * H))
        conv = jnp.einsum('bhk,bkw->bhw', a_b, t_stack,
                          preferred_element_type=jnp.float32)   # (TB, H, W)
        sa = jax.nn.sigmoid(conv).reshape(TB, 1, HW)

        # ---- ChannelAttention on e_f = e + e*sa (never materialised in full) -------
        pooled = jnp.max(e * (1.0 + sa), axis=2)                # (TB, C) global max pool
        h1 = jnp.maximum(
            jnp.sum(pooled[:, None, :] * w1_ref[...][None, :, :], axis=2), 0.0)  # (TB, C16)
        att = jax.nn.sigmoid(
            jnp.sum(h1[:, None, :] * w2_ref[...][None, :, :], axis=2))           # (TB, C)

        # ---- e_out = e * channel attention ------------------------------------------
        o_ref[...] = (e * att[:, :, None]).astype(o_ref.dtype)

    return kernel


def _build_row_band_matrix(sa_w, H):
    """A_blk[h, j*H + h'] = k[h' - h + PAD, j]  (zero outside the 7-tap band)."""
    k = sa_w.reshape(KS, KS).astype(jnp.float32)
    hh = jnp.arange(H)
    dy = hh[None, :] - hh[:, None] + PAD                          # (H, H): h' - h + PAD
    valid = (dy >= 0) & (dy < KS)
    a = jnp.where(valid[:, :, None], k[jnp.clip(dy, 0, KS - 1), :], 0.0)   # (H, H', KS)
    return jnp.transpose(a, (0, 2, 1)).reshape(H, KS * H)                   # (H, KS*H)


def _pick_batch_tile(B, per_batch_block_bytes):
    """Largest divisor of B giving ~>=2 MiB per-array DMAs within a 24 MiB 2x-buffered budget."""
    budget = 24 << 20
    target = max(1, (2 << 20) // max(per_batch_block_bytes, 1))
    tb = 1
    for cand in range(1, B + 1):
        if B % cand == 0 and cand <= target and 4 * 2 * cand * per_batch_block_bytes <= budget:
            tb = cand
    return tb


@jax.jit
def efem(d, e, l, sa_w, fc1_w, fc2_w):
    """EFEM.forward(d, e, l) -> e_out, NCHW like the PyTorch module."""
    B, C, H, W = d.shape
    HW = H * W
    C16 = fc1_w.shape[0]
    esize = jnp.dtype(d.dtype).itemsize

    a_blk = _build_row_band_matrix(sa_w, H)              # (H, KS*H) banded row-conv weights
    w1 = fc1_w.reshape(C16, C).astype(jnp.float32)       # ChannelAttention fc1
    w2 = fc2_w.reshape(C, C16).astype(jnp.float32)       # ChannelAttention fc2

    # Lane-dense layout for the big tensors (free row-major reshape in the wrapper).
    d2 = d.reshape(B, C, HW)
    e2 = e.reshape(B, C, HW)
    l2 = l.reshape(B, C, HW)

    per_batch_bytes = C * HW * esize
    TB = _pick_batch_tile(B, per_batch_bytes)
    grid = (B // TB,)

    footprint = 4 * 2 * TB * per_batch_bytes             # 3 in + 1 out, double-buffered
    vmem_limit = int(min(48 << 20, max(16 << 20, footprint + (8 << 20))))

    flops = B * (6 * C * HW + 2 * KS * H * H * W + 4 * C * C16)
    transcendentals = B * (HW + C + C16)
    bytes_accessed = 4 * B * C * HW * esize + 4 * (H * KS * H + 2 * C * C16)

    kernel = _make_kernel(TB, C, H, W, C16)
    big_spec = pl.BlockSpec((TB, C, HW), lambda b: (b, 0, 0))

    out = pl.pallas_call(
        kernel,
        out_shape=jax.ShapeDtypeStruct((B, C, HW), e.dtype),
        grid=grid,
        in_specs=[
            big_spec,                                          # d
            big_spec,                                          # e
            big_spec,                                          # l
            pl.BlockSpec((H, KS * H), lambda b: (0, 0)),       # stacked banded conv matrix
            pl.BlockSpec((C16, C), lambda b: (0, 0)),          # fc1 weight
            pl.BlockSpec((C, C16), lambda b: (0, 0)),          # fc2 weight
        ],
        out_specs=big_spec,
        compiler_params=pltpu.CompilerParams(
            dimension_semantics=("parallel",),
            vmem_limit_bytes=vmem_limit),
        cost_estimate=pl.CostEstimate(
            flops=flops, transcendentals=transcendentals,
            bytes_accessed=bytes_accessed),
    )(d2, e2, l2, a_blk, w1, w2)
    return out.reshape(B, C, H, W)


def _reference(d, e, l, sa_w, fc1_w, fc2_w):
    """Pure-JAX reference mirroring the PyTorch EFEM forward."""
    hi = jax.lax.Precision.HIGHEST
    mul_fuse = d * e * l
    m = jnp.max(mul_fuse, axis=1, keepdims=True)                        # torch.max(dim=1)
    conv = jax.lax.conv_general_dilated(
        m, sa_w, window_strides=(1, 1), padding=[(PAD, PAD), (PAD, PAD)],
        dimension_numbers=("NCHW", "OIHW", "NCHW"), precision=hi)
    sa = jax.nn.sigmoid(conv)                                           # SpatialAttention
    e_f = e + e * sa
    pooled = jnp.max(e_f, axis=(2, 3))                                  # AdaptiveMaxPool2d(1)
    c16, c = fc1_w.shape[0], fc1_w.shape[1]
    h1 = jnp.maximum(jnp.dot(pooled, fc1_w.reshape(c16, c).T, precision=hi), 0.0)
    att = jax.nn.sigmoid(jnp.dot(h1, fc2_w.reshape(c, c16).T, precision=hi))
    return e * att[:, :, None, None]


if __name__ == "__main__":
    key = jax.random.PRNGKey(0)
    kd, ke, kl, kws, kw1, kw2 = jax.random.split(key, 6)

    # Small shapes consistent with the module: C must be >= 16 (C//16 hidden dim).
    B, C, H, W = 2, 32, 16, 16
    C16 = C // 16

    d = jax.random.normal(kd, (B, C, H, W), jnp.float32)
    e = jax.random.normal(ke, (B, C, H, W), jnp.float32)
    l = jax.random.normal(kl, (B, C, H, W), jnp.float32)

    # nn.Conv2d-shaped parameters: SpatialAttention conv (1,1,7,7),
    # ChannelAttention fc1 (C//16, C, 1, 1), fc2 (C, C//16, 1, 1) -- all bias-free.
    sa_w = 0.05 * jax.random.normal(kws, (1, 1, KS, KS), jnp.float32)
    fc1_w = 0.2 * jax.random.normal(kw1, (C16, C, 1, 1), jnp.float32)
    fc2_w = 0.2 * jax.random.normal(kw2, (C, C16, 1, 1), jnp.float32)

    out = efem(d, e, l, sa_w, fc1_w, fc2_w)
    out = jax.block_until_ready(out)

    ref = _reference(d, e, l, sa_w, fc1_w, fc2_w)
    assert out.shape == (B, C, H, W)
    max_err = float(jnp.max(jnp.abs(out - ref)))
    assert jnp.allclose(out, ref, atol=1e-3, rtol=1e-3), f"max abs err {max_err}"

    print("KERNEL_OK")
</pallas_src>

<mosaic_0001>
module attributes {stable_mosaic.version = 11 : i64} {
  func.func @kernel(%arg0: i32, %arg1: memref<2x32x256xf32, #tpu.memory_space<vmem>>, %arg2: memref<2x32x256xf32, #tpu.memory_space<vmem>>, %arg3: memref<2x32x256xf32, #tpu.memory_space<vmem>>, %arg4: memref<16x112xf32, #tpu.memory_space<vmem>>, %arg5: memref<2x32xf32, #tpu.memory_space<vmem>>, %arg6: memref<32x2xf32, #tpu.memory_space<vmem>>, %arg7: memref<2x32x256xf32, #tpu.memory_space<vmem>>) attributes {dimension_semantics = [#tpu.dimension_semantics<parallel>], iteration_bounds = array<i64: 1>, scalar_prefetch = 0 : i64, scratch_operands = 0 : i64, tpu.core_type = #tpu.core_type<tc>, window_params = [{transform_indices = @transform_0, window_bounds = array<i64: 2, 32, 256>}, {transform_indices = @transform_1, window_bounds = array<i64: 2, 32, 256>}, {transform_indices = @transform_2, window_bounds = array<i64: 2, 32, 256>}, {pipeline_mode = #tpu.pipeline_mode<synchronous>, transform_indices = @transform_3, window_bounds = array<i64: 16, 112>}, {pipeline_mode = #tpu.pipeline_mode<synchronous>, transform_indices = @transform_4, window_bounds = array<i64: 2, 32>}, {pipeline_mode = #tpu.pipeline_mode<synchronous>, transform_indices = @transform_5, window_bounds = array<i64: 32, 2>}, {transform_indices = @transform_6, window_bounds = array<i64: 2, 32, 256>}]} {
    %c0 = arith.constant 0 : index
    %c0_0 = arith.constant 0 : index
    %c0_1 = arith.constant 0 : index
    %0 = vector.load %arg1[%c0, %c0_0, %c0_1] : memref<2x32x256xf32, #tpu.memory_space<vmem>>, vector<2x32x256xf32>
    %c0_2 = arith.constant 0 : index
    %c0_3 = arith.constant 0 : index
    %c0_4 = arith.constant 0 : index
    %1 = vector.load %arg2[%c0_2, %c0_3, %c0_4] : memref<2x32x256xf32, #tpu.memory_space<vmem>>, vector<2x32x256xf32>
    %c0_5 = arith.constant 0 : index
    %c0_6 = arith.constant 0 : index
    %c0_7 = arith.constant 0 : index
    %2 = vector.load %arg3[%c0_5, %c0_6, %c0_7] : memref<2x32x256xf32, #tpu.memory_space<vmem>>, vector<2x32x256xf32>
    %3 = arith.mulf %0, %1 : vector<2x32x256xf32>
    %4 = arith.mulf %3, %2 : vector<2x32x256xf32>
    %cst = arith.constant dense<0xFF800000> : vector<2x256xf32>
    %5 = vector.multi_reduction <maximumf>, %4, %cst [1] : vector<2x32x256xf32> to vector<2x256xf32>
    %6 = vector.shape_cast %5 : vector<2x256xf32> to vector<2x16x16xf32>
    %cst_8 = arith.constant 0.000000e+00 : f32
    %7 = vector.broadcast %cst_8 : f32 to vector<2x16x3xf32>
    %8 = tpu.concatenate %7, %6, %7 in 2 : vector<2x16x3xf32>, vector<2x16x16xf32>, vector<2x16x3xf32> -> vector<2x16x22xf32>
    %9 = vector.extract_strided_slice %8 {offsets = [0, 0, 0], sizes = [2, 16, 16], strides = [1, 1, 1]} : vector<2x16x22xf32> to vector<2x16x16xf32>
    %10 = vector.extract_strided_slice %8 {offsets = [0, 0, 1], sizes = [2, 16, 16], strides = [1, 1, 1]} : vector<2x16x22xf32> to vector<2x16x16xf32>
    %11 = vector.extract_strided_slice %8 {offsets = [0, 0, 2], sizes = [2, 16, 16], strides = [1, 1, 1]} : vector<2x16x22xf32> to vector<2x16x16xf32>
    %12 = vector.extract_strided_slice %8 {offsets = [0, 0, 3], sizes = [2, 16, 16], strides = [1, 1, 1]} : vector<2x16x22xf32> to vector<2x16x16xf32>
    %13 = vector.extract_strided_slice %8 {offsets = [0, 0, 4], sizes = [2, 16, 16], strides = [1, 1, 1]} : vector<2x16x22xf32> to vector<2x16x16xf32>
    %14 = vector.extract_strided_slice %8 {offsets = [0, 0, 5], sizes = [2, 16, 16], strides = [1, 1, 1]} : vector<2x16x22xf32> to vector<2x16x16xf32>
    %15 = vector.extract_strided_slice %8 {offsets = [0, 0, 6], sizes = [2, 16, 16], strides = [1, 1, 1]} : vector<2x16x22xf32> to vector<2x16x16xf32>
    %16 = tpu.concatenate %9, %10, %11, %12, %13, %14, %15 in 1 : vector<2x16x16xf32>, vector<2x16x16xf32>, vector<2x16x16xf32>, vector<2x16x16xf32>, vector<2x16x16xf32>, vector<2x16x16xf32>, vector<2x16x16xf32> -> vector<2x112x16xf32>
    %c0_9 = arith.constant 0 : index
    %c0_10 = arith.constant 0 : index
    %17 = vector.load %arg4[%c0_9, %c0_10] : memref<16x112xf32, #tpu.memory_space<vmem>>, vector<16x112xf32>
    %18 = vector.shape_cast %17 : vector<16x112xf32> to vector<1x16x112xf32>
    %19 = vector.broadcast %18 : vector<1x16x112xf32> to vector<2x16x112xf32>
    "tpu.trace_start"() <{level = 10 : i32, message = "bhk,bkw->bhw"}> : () -> ()
    %cst_11 = arith.constant dense<0.000000e+00> : vector<2x16x16xf32>
    %20 = tpu.matmul %19, %16, %cst_11 {dimension_numbers = #tpu.dot_dimension_numbers<[2], [1], [1], [2], [0, 0, 0, 1, 1, 2], [0], [0]>} : vector<2x16x112xf32>, vector<2x112x16xf32>, vector<2x16x16xf32> -> vector<2x16x16xf32>
    "tpu.trace_stop"() : () -> ()
    %21 = arith.negf %20 : vector<2x16x16xf32>
    %22 = math.exp %21 : vector<2x16x16xf32>
    %cst_12 = arith.constant 1.000000e+00 : f32
    %23 = vector.broadcast %cst_12 : f32 to vector<2x16x16xf32>
    %24 = arith.addf %23, %22 : vector<2x16x16xf32>
    %25 = arith.divf %23, %24 : vector<2x16x16xf32>
    %26 = vector.shape_cast %25 : vector<2x16x16xf32> to vector<2x1x256xf32>
    %cst_13 = arith.constant 1.000000e+00 : f32
    %27 = vector.broadcast %cst_13 : f32 to vector<2x1x256xf32>
    %28 = arith.addf %27, %26 : vector<2x1x256xf32>
    %29 = vector.broadcast %28 : vector<2x1x256xf32> to vector<2x32x256xf32>
    %30 = arith.mulf %1, %29 : vector<2x32x256xf32>
    %cst_14 = arith.constant dense<0xFF800000> : vector<2x32xf32>
    %31 = vector.multi_reduction <maximumf>, %30, %cst_14 [2] : vector<2x32x256xf32> to vector<2x32xf32>
    %32 = vector.shape_cast %31 : vector<2x32xf32> to vector<2x1x32xf32>
    %c0_15 = arith.constant 0 : index
    %c0_16 = arith.constant 0 : index
    %33 = vector.load %arg5[%c0_15, %c0_16] : memref<2x32xf32, #tpu.memory_space<vmem>>, vector<2x32xf32>
    %34 = vector.shape_cast %33 : vector<2x32xf32> to vector<1x2x32xf32>
    %35 = vector.broadcast %32 : vector<2x1x32xf32> to vector<2x2x32xf32>
    %36 = vector.broadcast %34 : vector<1x2x32xf32> to vector<2x2x32xf32>
    %37 = arith.mulf %35, %36 : vector<2x2x32xf32>
    %cst_17 = arith.constant dense<0.000000e+00> : vector<2x2xf32>
    %38 = vector.multi_reduction <add>, %37, %cst_17 [2] : vector<2x2x32xf32> to vector<2x2xf32>
    %cst_18 = arith.constant 0.000000e+00 : f32
    %39 = vector.broadcast %cst_18 : f32 to vector<2x2xf32>
    %40 = arith.maximumf %38, %39 : vector<2x2xf32>
    %41 = vector.shape_cast %40 : vector<2x2xf32> to vector<2x1x2xf32>
    %c0_19 = arith.constant 0 : index
    %c0_20 = arith.constant 0 : index
    %42 = vector.load %arg6[%c0_19, %c0_20] : memref<32x2xf32, #tpu.memory_space<vmem>>, vector<32x2xf32>
    %43 = vector.shape_cast %42 : vector<32x2xf32> to vector<1x32x2xf32>
    %44 = vector.broadcast %41 : vector<2x1x2xf32> to vector<2x32x2xf32>
    %45 = vector.broadcast %43 : vector<1x32x2xf32> to vector<2x32x2xf32>
    %46 = arith.mulf %44, %45 : vector<2x32x2xf32>
    %cst_21 = arith.constant dense<0.000000e+00> : vector<2x32xf32>
    %47 = vector.multi_reduction <add>, %46, %cst_21 [2] : vector<2x32x2xf32> to vector<2x32xf32>
    %48 = arith.negf %47 : vector<2x32xf32>
    %49 = math.exp %48 : vector<2x32xf32>
    %cst_22 = arith.constant 1.000000e+00 : f32
    %50 = vector.broadcast %cst_22 : f32 to vector<2x32xf32>
    %51 = arith.addf %50, %49 : vector<2x32xf32>
    %52 = arith.divf %50, %51 : vector<2x32xf32>
    %53 = vector.shape_cast %52 : vector<2x32xf32> to vector<2x32x1xf32>
    %54 = vector.broadcast %53 : vector<2x32x1xf32> to vector<2x32x256xf32>
    %55 = arith.mulf %1, %54 : vector<2x32x256xf32>
    %c0_23 = arith.constant 0 : index
    %c0_24 = arith.constant 0 : index
    %c0_25 = arith.constant 0 : index
    %56 = vector.load %arg7[%c0_23, %c0_24, %c0_25] : memref<2x32x256xf32, #tpu.memory_space<vmem>>, vector<2x32x256xf32>
    tpu.vector_store %arg7[%c0_23, %c0_24, %c0_25], %55 {strides = array<i32>} : memref<2x32x256xf32, #tpu.memory_space<vmem>>, vector<2x32x256xf32>,
    return
  }
  func.func @transform_0(%arg0: i32) -> (i32, i32, i32) {
    %c0_i32 = arith.constant 0 : i32
    %c0_i32_0 = arith.constant 0 : i32
    %c0_i32_1 = arith.constant 0 : i32
    return %arg0, %c0_i32, %c0_i32_0 : i32, i32, i32
  }
  func.func @transform_1(%arg0: i32) -> (i32, i32, i32) {
    %c0_i32 = arith.constant 0 : i32
    %c0_i32_0 = arith.constant 0 : i32
    %c0_i32_1 = arith.constant 0 : i32
    return %arg0, %c0_i32, %c0_i32_0 : i32, i32, i32
  }
  func.func @transform_2(%arg0: i32) -> (i32, i32, i32) {
    %c0_i32 = arith.constant 0 : i32
    %c0_i32_0 = arith.constant 0 : i32
    %c0_i32_1 = arith.constant 0 : i32
    return %arg0, %c0_i32, %c0_i32_0 : i32, i32, i32
  }
  func.func @transform_3(%arg0: i32) -> (i32, i32) {
    %c0_i32 = arith.constant 0 : i32
    %c0_i32_0 = arith.constant 0 : i32
    %c0_i32_1 = arith.constant 0 : i32
    return %c0_i32, %c0_i32_0 : i32, i32
  }
  func.func @transform_4(%arg0: i32) -> (i32, i32) {
    %c0_i32 = arith.constant 0 : i32
    %c0_i32_0 = arith.constant 0 : i32
    %c0_i32_1 = arith.constant 0 : i32
    return %c0_i32, %c0_i32_0 : i32, i32
  }
  func.func @transform_5(%arg0: i32) -> (i32, i32) {
    %c0_i32 = arith.constant 0 : i32
    %c0_i32_0 = arith.constant 0 : i32
    %c0_i32_1 = arith.constant 0 : i32
    return %c0_i32, %c0_i32_0 : i32, i32
  }
  func.func @transform_6(%arg0: i32) -> (i32, i32, i32) {
    %c0_i32 = arith.constant 0 : i32
    %c0_i32_0 = arith.constant 0 : i32
    %c0_i32_1 = arith.constant 0 : i32
    return %arg0, %c0_i32, %c0_i32_0 : i32, i32, i32
  }
}

</mosaic_0001>

<llo_original>
// kernel: efem.1
$region0: #{efem.1}
  #allocation0 [shape = 'u32[]', space=smem, size = 0x4, offset = 0x4, fixed_abs, tag = 'smem constant byte address 0x4 - core index']
  #allocation1 [shape = 'u32[144,128]{1,0:T(1,128)}', space=vmem, size = 0x12000, scoped, tag = 'internal scratch']
  %s0 = inlined_call_operand.vmem [shape: f32[2,32,256], index: 0, kind: input, shape index: {}]
  %s1 = inlined_call_operand.vmem [shape: f32[2,32,256], index: 1, kind: input, shape index: {}]
  %s2 = inlined_call_operand.vmem [shape: f32[2,32,256], index: 2, kind: input, shape index: {}]
  %s3 = inlined_call_operand.vmem [shape: f32[16,112], index: 3, kind: input, shape index: {}]
  %s4 = inlined_call_operand.vmem [shape: f32[2,32], index: 4, kind: input, shape index: {}]
  %s5 = inlined_call_operand.vmem [shape: f32[32,2], index: 5, kind: input, shape index: {}]
  %s6 = inlined_call_operand.vmem [shape: f32[2,32,256], index: 6, kind: output, shape index: {}]
  %s7 = sld [smem:[#allocation0]]
  $region34: #{efem.1} parent=0
    _
  %s9 = ssub.s32 1, %s7
  %s10 = scalar_select 0, %s9, %s7
  // Predicated region
  $region2: #{efem.1} parent=0 // pred_check
    _
  $region3: #{efem.1} parent=0 // pred_check_branch
    %12 = sbr.rel (0) target = $region5
  $region4: #{efem.1} parent=0 // pred_region
    _
  $region5: #{efem.1} parent=0 // pred_fallthru
    _
  // Predicated region
  $region6: #{efem.1} parent=0 // pred_check
    _
  $region7: #{efem.1} parent=0 // pred_check_branch
    %14 = sbr.rel (0) target = $region9
  $region8: #{efem.1} parent=0 // pred_region
    _
  $region9: #{efem.1} parent=0 // pred_fallthru
    _
  // Predicated region
  $region10: #{efem.1} parent=0 // pred_check
    _
  $region11: #{efem.1} parent=0 // pred_check_branch
    %16 = sbr.rel (0) target = $region13
  $region12: #{efem.1} parent=0 // pred_region
    _
  $region13: #{efem.1} parent=0 // pred_fallthru
    _
  // Predicated region
  $region14: #{efem.1} parent=0 // pred_check
    _
  $region15: #{efem.1} parent=0 // pred_check_branch
    %18 = sbr.rel (0) target = $region17
  $region16: #{efem.1} parent=0 // pred_region
    _
  $region17: #{efem.1} parent=0 // pred_fallthru
    _
  // Predicated region
  $region18: #{efem.1} parent=0 // pred_check
    _
  $region19: #{efem.1} parent=0 // pred_check_branch
    %20 = sbr.rel (0) target = $region21
  $region20: #{efem.1} parent=0 // pred_region
    _
  $region21: #{efem.1} parent=0 // pred_fallthru
    _
  // Predicated region
  $region22: #{efem.1} parent=0 // pred_check
    _
  $region23: #{efem.1} parent=0 // pred_check_branch
    %22 = sbr.rel (0) target = $region25
  $region24: #{efem.1} parent=0 // pred_region
    _
  $region25: #{efem.1} parent=0 // pred_fallthru
    _
  %v23 = vld [vmem:[%s0] sm:$0xff]
  %v24 = vld [vmem:[%s0 + $0x8] sm:$0xff]
  %v25 = vld [vmem:[%s0 + $0x10] sm:$0xff]
  %v26 = vld [vmem:[%s0 + $0x18] sm:$0xff]
  %v27 = vld [vmem:[%s0 + $0x20] sm:$0xff]
  %v28 = vld [vmem:[%s0 + $0x28] sm:$0xff]
  %v29 = vld [vmem:[%s0 + $0x30] sm:$0xff]
  %v30 = vld [vmem:[%s0 + $0x38] sm:$0xff]
  %v31 = vld [vmem:[%s0 + $0x40] sm:$0xff]
  %v32 = vld [vmem:[%s0 + $0x48] sm:$0xff]
  %v33 = vld [vmem:[%s0 + $0x50] sm:$0xff]
  %v34 = vld [vmem:[%s0 + $0x58] sm:$0xff]
  %v35 = vld [vmem:[%s0 + $0x60] sm:$0xff]
  %v36 = vld [vmem:[%s0 + $0x68] sm:$0xff]
  %v37 = vld [vmem:[%s0 + $0x70] sm:$0xff]
  %v38 = vld [vmem:[%s0 + $0x78] sm:$0xff]
  %v39 = vld [vmem:[%s1] sm:$0xff]
  %v40 = vld [vmem:[%s1 + $0x8] sm:$0xff]
  %v41 = vld [vmem:[%s1 + $0x10] sm:$0xff]
  %v42 = vld [vmem:[%s1 + $0x18] sm:$0xff]
  %v43 = vld [vmem:[%s1 + $0x20] sm:$0xff]
  %v44 = vld [vmem:[%s1 + $0x28] sm:$0xff]
  %v45 = vld [vmem:[%s1 + $0x30] sm:$0xff]
  %v46 = vld [vmem:[%s1 + $0x38] sm:$0xff]
  %v47 = vld [vmem:[%s1 + $0x40] sm:$0xff]
  %v48 = vld [vmem:[%s1 + $0x48] sm:$0xff]
  %v49 = vld [vmem:[%s1 + $0x50] sm:$0xff]
  %v50 = vld [vmem:[%s1 + $0x58] sm:$0xff]
  %v51 = vld [vmem:[%s1 + $0x60] sm:$0xff]
  %v52 = vld [vmem:[%s1 + $0x68] sm:$0xff]
  %v53 = vld [vmem:[%s1 + $0x70] sm:$0xff]
  %v54 = vld [vmem:[%s1 + $0x78] sm:$0xff]
  %v55 = vld [vmem:[%s2] sm:$0xff]
  %v56 = vld [vmem:[%s2 + $0x8] sm:$0xff]
  %v57 = vld [vmem:[%s2 + $0x10] sm:$0xff]
  %v58 = vld [vmem:[%s2 + $0x18] sm:$0xff]
  %v59 = vld [vmem:[%s2 + $0x20] sm:$0xff]
  %v60 = vld [vmem:[%s2 + $0x28] sm:$0xff]
  %v61 = vld [vmem:[%s2 + $0x30] sm:$0xff]
  %v62 = vld [vmem:[%s2 + $0x38] sm:$0xff]
  %v63 = vld [vmem:[%s2 + $0x40] sm:$0xff]
  %v64 = vld [vmem:[%s2 + $0x48] sm:$0xff]
  %v65 = vld [vmem:[%s2 + $0x50] sm:$0xff]
  %v66 = vld [vmem:[%s2 + $0x58] sm:$0xff]
  %v67 = vld [vmem:[%s2 + $0x60] sm:$0xff]
  %v68 = vld [vmem:[%s2 + $0x68] sm:$0xff]
  %v69 = vld [vmem:[%s2 + $0x70] sm:$0xff]
  %v70 = vld [vmem:[%s2 + $0x78] sm:$0xff]
  %v71 = vmul.f32 %v23, %v39
  %v72 = vmul.f32 %v24, %v40
  %v73 = vmul.f32 %v25, %v41
  %v74 = vmul.f32 %v26, %v42
  %v75 = vmul.f32 %v27, %v43
  %v76 = vmul.f32 %v28, %v44
  %v77 = vmul.f32 %v29, %v45
  %v78 = vmul.f32 %v30, %v46
  %v79 = vmul.f32 %v31, %v47
  %v80 = vmul.f32 %v32, %v48
  %v81 = vmul.f32 %v33, %v49
  %v82 = vmul.f32 %v34, %v50
  %v83 = vmul.f32 %v35, %v51
  %v84 = vmul.f32 %v36, %v52
  %v85 = vmul.f32 %v37, %v53
  %v86 = vmul.f32 %v38, %v54
  %v87 = vmul.f32 %v71, %v55
  %v88 = vmul.f32 %v72, %v56
  %v89 = vmul.f32 %v73, %v57
  %v90 = vmul.f32 %v74, %v58
  %v91 = vmul.f32 %v75, %v59
  %v92 = vmul.f32 %v76, %v60
  %v93 = vmul.f32 %v77, %v61
  %v94 = vmul.f32 %v78, %v62
  %v95 = vmul.f32 %v79, %v63
  %v96 = vmul.f32 %v80, %v64
  %v97 = vmul.f32 %v81, %v65
  %v98 = vmul.f32 %v82, %v66
  %v99 = vmul.f32 %v83, %v67
  %v100 = vmul.f32 %v84, %v68
  %v101 = vmul.f32 %v85, %v69
  %v102 = vmul.f32 %v86, %v70
  %v103 = vmax.f32 %v87, %v89
  %v104 = vmax.f32 %v103, %v91
  %v105 = vmax.f32 %v104, %v93
  %v106 = vrot.slane %v105, 4
  %v107 = vmax.f32 %v105, %v106
  %v108 = vrot.slane %v107, 2
  %v109 = vmax.f32 %v107, %v108
  %v110 = vrot.slane %v109, 1
  %v111 = vmax.f32 %v109, %v110
  %v112 = vmax.f32 %v88, %v90
  %v113 = vmax.f32 %v112, %v92
  %v114 = vmax.f32 %v113, %v94
  %v115 = vrot.slane %v114, 4
  %v116 = vmax.f32 %v114, %v115
  %v117 = vrot.slane %v116, 2
  %v118 = vmax.f32 %v116, %v117
  %v119 = vrot.slane %v118, 1
  %v120 = vmax.f32 %v118, %v119
  %v121 = vmax.f32 %v95, %v97
  %v122 = vmax.f32 %v121, %v99
  %v123 = vmax.f32 %v122, %v101
  %v124 = vrot.slane %v123, 4
  %v125 = vmax.f32 %v123, %v124
  %v126 = vrot.slane %v125, 2
  %v127 = vmax.f32 %v125, %v126
  %v128 = vrot.slane %v127, 1
  %v129 = vmax.f32 %v127, %v128
  %v130 = vmax.f32 %v96, %v98
  %v131 = vmax.f32 %v130, %v100
  %v132 = vmax.f32 %v131, %v102
  %v133 = vrot.slane %v132, 4
  %v134 = vmax.f32 %v132, %v133
  %v135 = vrot.slane %v134, 2
  %v136 = vmax.f32 %v134, %v135
  %v137 = vrot.slane %v136, 1
  %v138 = vmax.f32 %v136, %v137
  %141 = vrot.lane.b32.xlu0 %v111, 112
  %v142 = vpop.permute.xlu0 %141
  %143 = vrot.lane.b32.xlu0 %v129, 112
  %v144 = vpop.permute.xlu0 %143
  %145 = vrot.lane.b32.xlu0 %v111, 96
  %v146 = vpop.permute.xlu0 %145
  %147 = vrot.lane.b32.xlu0 %v129, 96
  %v148 = vpop.permute.xlu0 %147
  %149 = vrot.lane.b32.xlu0 %v111, 80
  %v150 = vpop.permute.xlu0 %149
  %151 = vrot.lane.b32.xlu0 %v129, 80
  %v152 = vpop.permute.xlu0 %151
  %153 = vrot.lane.b32.xlu0 %v111, 64
  %v154 = vpop.permute.xlu0 %153
  %155 = vrot.lane.b32.xlu0 %v129, 64
  %v156 = vpop.permute.xlu0 %155
  %157 = vrot.lane.b32.xlu0 %v111, 48
  %v158 = vpop.permute.xlu0 %157
  %159 = vrot.lane.b32.xlu0 %v129, 48
  %v160 = vpop.permute.xlu0 %159
  %161 = vrot.lane.b32.xlu0 %v111, 32
  %v162 = vpop.permute.xlu0 %161
  %163 = vrot.lane.b32.xlu0 %v129, 32
  %v164 = vpop.permute.xlu0 %163
  %165 = vrot.lane.b32.xlu0 %v111, 16
  %v166 = vpop.permute.xlu0 %165
  %167 = vrot.lane.b32.xlu0 %v129, 16
  %v168 = vpop.permute.xlu0 %167
  %171 = vrot.lane.b32.xlu0 %v120, 112
  %v172 = vpop.permute.xlu0 %171
  %173 = vrot.lane.b32.xlu0 %v138, 112
  %v174 = vpop.permute.xlu0 %173
  %175 = vrot.lane.b32.xlu0 %v120, 96
  %v176 = vpop.permute.xlu0 %175
  %177 = vrot.lane.b32.xlu0 %v138, 96
  %v178 = vpop.permute.xlu0 %177
  %179 = vrot.lane.b32.xlu0 %v120, 80
  %v180 = vpop.permute.xlu0 %179
  %181 = vrot.lane.b32.xlu0 %v138, 80
  %v182 = vpop.permute.xlu0 %181
  %183 = vrot.lane.b32.xlu0 %v120, 64
  %v184 = vpop.permute.xlu0 %183
  %185 = vrot.lane.b32.xlu0 %v138, 64
  %v186 = vpop.permute.xlu0 %185
  %187 = vrot.lane.b32.xlu0 %v120, 48
  %v188 = vpop.permute.xlu0 %187
  %189 = vrot.lane.b32.xlu0 %v138, 48
  %v190 = vpop.permute.xlu0 %189
  %191 = vrot.lane.b32.xlu0 %v120, 32
  %v192 = vpop.permute.xlu0 %191
  %193 = vrot.lane.b32.xlu0 %v138, 32
  %v194 = vpop.permute.xlu0 %193
  %195 = vrot.lane.b32.xlu0 %v120, 16
  %v196 = vpop.permute.xlu0 %195
  %197 = vrot.lane.b32.xlu0 %v138, 16
  %v198 = vpop.permute.xlu0 %197
  %v199 = vrot.slane %v129, 7
  %vm200 = vcmask 1041409
  %v201 = vsel %vm200, %v199, %v111
  %v202 = vrot.slane %v144, 7
  %v203 = vsel %vm200, %v202, %v142
  %v204 = vrot.slane %v148, 7
  %v205 = vsel %vm200, %v204, %v146
  %v206 = vrot.slane %v152, 7
  %v207 = vsel %vm200, %v206, %v150
  %v208 = vrot.slane %v156, 7
  %v209 = vsel %vm200, %v208, %v154
  %v210 = vrot.slane %v160, 7
  %v211 = vsel %vm200, %v210, %v158
  %v212 = vrot.slane %v164, 7
  %v213 = vsel %vm200, %v212, %v162
  %v214 = vrot.slane %v168, 7
  %v215 = vsel %vm200, %v214, %v166
  %v216 = vrot.slane %v138, 7
  %v217 = vsel %vm200, %v216, %v120
  %v218 = vrot.slane %v174, 7
  %v219 = vsel %vm200, %v218, %v172
  %v220 = vrot.slane %v178, 7
  %v221 = vsel %vm200, %v220, %v176
  %v222 = vrot.slane %v182, 7
  %v223 = vsel %vm200, %v222, %v180
  %v224 = vrot.slane %v186, 7
  %v225 = vsel %vm200, %v224, %v184
  %v226 = vrot.slane %v190, 7
  %v227 = vsel %vm200, %v226, %v188
  %v228 = vrot.slane %v194, 7
  %v229 = vsel %vm200, %v228, %v192
  %v230 = vrot.slane %v198, 7
  %v231 = vsel %vm200, %v230, %v196
  %v248 = vcombine.low %v201, %v205
  %v250 = vunpack.c.l.s4 1983009808
  %v251 = vunpack.c.0.s8 %v250
  %v252 = vlaneseq
  %v253 = vshrl.u32 %v252, 7
  %v254 = vsub.s32 %v251, %v253
  %v255 = vrot.slane %v248, %v254
  %v256 = vcombine.low %v203, %v207
  %v258 = vunpack.c.l.s4 1983009808
  %v259 = vunpack.c.0.s8 %v258
  %v260 = vlaneseq
  %v261 = vshrl.u32 %v260, 7
  %v262 = vsub.s32 %v259, %v261
  %v263 = vrot.slane %v256, %v262
  %v264 = vcombine.low %v209, %v213
  %v266 = vunpack.c.l.s4 1983009808
  %v267 = vunpack.c.0.s8 %v266
  %v268 = vlaneseq
  %v269 = vshrl.u32 %v268, 7
  %v270 = vsub.s32 %v267, %v269
  %v271 = vrot.slane %v264, %v270
  %v272 = vcombine.low %v211, %v215
  %v274 = vunpack.c.l.s4 1983009808
  %v275 = vunpack.c.0.s8 %v274
  %v276 = vlaneseq
  %v277 = vshrl.u32 %v276, 7
  %v278 = vsub.s32 %v275, %v277
  %v279 = vrot.slane %v272, %v278
  %v280 = vcombine.low %v255, %v263
  %v282 = vunpack.c.l.s4 1934713408
  %v283 = vunpack.c.0.s8 %v282
  %v284 = vlaneseq
  %v285 = vshrl.u32 %v284, 7
  %v286 = vsub.s32 %v283, %v285
  %v287 = vrot.slane %v280, %v286
  %v288 = vcombine.low %v271, %v279
  %v290 = vunpack.c.l.s4 1934713408
  %v291 = vunpack.c.0.s8 %v290
  %v292 = vlaneseq
  %v293 = vshrl.u32 %v292, 7
  %v294 = vsub.s32 %v291, %v293
  %v295 = vrot.slane %v288, %v294
  %v296 = vcombine.low %v287, %v295
  %v297 = vcombine.high %v287, %v295
  %v298 = vcombine.low %v217, %v221
  %v300 = vunpack.c.l.s4 1983009808
  %v301 = vunpack.c.0.s8 %v300
  %v302 = vlaneseq
  %v303 = vshrl.u32 %v302, 7
  %v304 = vsub.s32 %v301, %v303
  %v305 = vrot.slane %v298, %v304
  %v306 = vcombine.low %v219, %v223
  %v308 = vunpack.c.l.s4 1983009808
  %v309 = vunpack.c.0.s8 %v308
  %v310 = vlaneseq
  %v311 = vshrl.u32 %v310, 7
  %v312 = vsub.s32 %v309, %v311
  %v313 = vrot.slane %v306, %v312
  %v314 = vcombine.low %v225, %v229
  %v316 = vunpack.c.l.s4 1983009808
  %v317 = vunpack.c.0.s8 %v316
  %v318 = vlaneseq
  %v319 = vshrl.u32 %v318, 7
  %v320 = vsub.s32 %v317, %v319
  %v321 = vrot.slane %v314, %v320
  %v322 = vcombine.low %v227, %v231
  %v324 = vunpack.c.l.s4 1983009808
  %v325 = vunpack.c.0.s8 %v324
  %v326 = vlaneseq
  %v327 = vshrl.u32 %v326, 7
  %v328 = vsub.s32 %v325, %v327
  %v329 = vrot.slane %v322, %v328
  %v330 = vcombine.low %v305, %v313
  %v332 = vunpack.c.l.s4 1934713408
  %v333 = vunpack.c.0.s8 %v332
  %v334 = vlaneseq
  %v335 = vshrl.u32 %v334, 7
  %v336 = vsub.s32 %v333, %v335
  %v337 = vrot.slane %v330, %v336
  %v338 = vcombine.low %v321, %v329
  %v340 = vunpack.c.l.s4 1934713408
  %v341 = vunpack.c.0.s8 %v340
  %v342 = vlaneseq
  %v343 = vshrl.u32 %v342, 7
  %v344 = vsub.s32 %v341, %v343
  %v345 = vrot.slane %v338, %v344
  %v346 = vcombine.low %v337, %v345
  %v347 = vcombine.high %v337, %v345
  %352 = vrot.lane.b32.xlu0 %v296, 3
  %v353 = vpop.permute.xlu0 %352
  %354 = vrot.lane.b32.xlu0 %v346, 3
  %v355 = vpop.permute.xlu0 %354
  %356 = vrot.lane.b32.xlu0 %v297, 3
  %v357 = vpop.permute.xlu0 %356
  %358 = vrot.lane.b32.xlu0 %v347, 3
  %v359 = vpop.permute.xlu0 %358
  %vm364 = vcmask 23552
  %v365 = vsel %vm364, 0.0, %v353
  %v366 = vsel %vm364, 0.0, %v355
  %v367 = vsel %vm364, 0.0, %v357
  %v368 = vsel %vm364, 0.0, %v359
  %vm369 = vcmask 154624
  %v370 = vsel %vm369, %v365, 0.0
  %v371 = vsel %vm369, %v366, 0.0
  %v372 = vsel %vm369, %v367, 0.0
  %v373 = vsel %vm369, %v368, 0.0
  %378 = vrot.lane.b32.xlu0 %v370, 127
  %v379 = vpop.permute.xlu0 %378
  %380 = vrot.lane.b32.xlu0 %v371, 127
  %v381 = vpop.permute.xlu0 %380
  %382 = vrot.lane.b32.xlu0 %v372, 127
  %v383 = vpop.permute.xlu0 %382
  %384 = vrot.lane.b32.xlu0 %v373, 127
  %v385 = vpop.permute.xlu0 %384
  %390 = vrot.lane.b32.xlu0 %v370, 126
  %v391 = vpop.permute.xlu0 %390
  %392 = vrot.lane.b32.xlu0 %v371, 126
  %v393 = vpop.permute.xlu0 %392
  %394 = vrot.lane.b32.xlu0 %v372, 126
  %v395 = vpop.permute.xlu0 %394
  %396 = vrot.lane.b32.xlu0 %v373, 126
  %v397 = vpop.permute.xlu0 %396
  %402 = vrot.lane.b32.xlu0 %v370, 125
  %v403 = vpop.permute.xlu0 %402
  %404 = vrot.lane.b32.xlu0 %v371, 125
  %v405 = vpop.permute.xlu0 %404
  %406 = vrot.lane.b32.xlu0 %v372, 125
  %v407 = vpop.permute.xlu0 %406
  %408 = vrot.lane.b32.xlu0 %v373, 125
  %v409 = vpop.permute.xlu0 %408
  %414 = vrot.lane.b32.xlu0 %v370, 124
  %v415 = vpop.permute.xlu0 %414
  %416 = vrot.lane.b32.xlu0 %v371, 124
  %v417 = vpop.permute.xlu0 %416
  %418 = vrot.lane.b32.xlu0 %v372, 124
  %v419 = vpop.permute.xlu0 %418
  %420 = vrot.lane.b32.xlu0 %v373, 124
  %v421 = vpop.permute.xlu0 %420
  %426 = vrot.lane.b32.xlu0 %v370, 123
  %v427 = vpop.permute.xlu0 %426
  %428 = vrot.lane.b32.xlu0 %v371, 123
  %v429 = vpop.permute.xlu0 %428
  %430 = vrot.lane.b32.xlu0 %v372, 123
  %v431 = vpop.permute.xlu0 %430
  %432 = vrot.lane.b32.xlu0 %v373, 123
  %v433 = vpop.permute.xlu0 %432
  %438 = vrot.lane.b32.xlu0 %v370, 122
  %v439 = vpop.permute.xlu0 %438
  %440 = vrot.lane.b32.xlu0 %v371, 122
  %v441 = vpop.permute.xlu0 %440
  %442 = vrot.lane.b32.xlu0 %v372, 122
  %v443 = vpop.permute.xlu0 %442
  %444 = vrot.lane.b32.xlu0 %v373, 122
  %v445 = vpop.permute.xlu0 %444
  %v450 = vld [vmem:[%s3] sm:$0xff]
  %v451 = vld [vmem:[%s3 + $0x8] sm:$0xff]
  %vm452 = vcmask 916480
  %v454 = vsel %vm452, %v450, 0
  %v457 = vsel %vm452, %v451, 0
  %459 = vmatprep.subr.mxu0 0.0
  %460 = vmatpush1.msra.mxu0 %v370
  %461 = vmatprep.subr.mxu0 0.0
  %462 = vmatpush1.msra.mxu0 %v371
  %463 = vmatprep.subr.mxu0 0.0
  %464 = vmatpush1.msra.mxu0 %v379
  %465 = vmatprep.subr.mxu0 0.0
  %466 = vmatpush1.msra.mxu0 %v381
  %467 = vmatprep.subr.mxu0 0.0
  %468 = vmatpush1.msra.mxu0 %v391
  %469 = vmatprep.subr.mxu0 0.0
  %470 = vmatpush1.msra.mxu0 %v393
  %471 = vmatprep.subr.mxu0 0.0
  %472 = vmatpush1.msra.mxu0 %v403
  %473 = vmatprep.subr.mxu0 0.0
  %474 = vmatpush1.msra.mxu0 %v405
  %475 = vmatprep.subr.mxu0 0.0
  %476 = vmatpush1.msra.mxu0 %v415
  %477 = vmatprep.subr.mxu0 0.0
  %478 = vmatpush1.msra.mxu0 %v417
  %479 = vmatprep.subr.mxu0 0.0
  %480 = vmatpush1.msra.mxu0 %v427
  %481 = vmatprep.subr.mxu0 0.0
  %482 = vmatpush1.msra.mxu0 %v429
  %483 = vmatprep.subr.mxu0 0.0
  %484 = vmatpush1.msra.mxu0 %v439
  %485 = vmatprep.subr.mxu0 0.0
  %486 = vmatpush1.msra.mxu0 %v441
  %487 = vmatprep.subr.mxu0 0.0
  %488 = vmatpush1.msra.mxu0 0.0
  %489 = vmatprep.subr.mxu0 0.0
  %490 = vmatpush1.msra.mxu0 0.0
  %491 = vmatprep.subr.mxu0 0.0
  %492 = vmatpush1.msra.mxu0 0.0
  %493 = vmatprep.subr.mxu0 0.0
  %494 = vmatpush1.msra.mxu0 0.0
  %495 = vmatprep.subr.mxu0 0.0
  %496 = vmatpush1.msra.mxu0 0.0
  %497 = vmatprep.subr.mxu0 0.0
  %498 = vmatpush1.msra.mxu0 0.0
  %499 = vmatprep.subr.mxu0 0.0
  %500 = vmatpush1.msra.mxu0 0.0
  %501 = vmatprep.subr.mxu0 0.0
  %502 = vmatpush1.msra.mxu0 0.0
  %503 = vmatprep.subr.mxu0 0.0
  %504 = vmatpush1.msra.mxu0 0.0
  %505 = vmatprep.subr.mxu0 0.0
  %506 = vmatpush1.msra.mxu0 0.0
  %507 = vmatprep.subr.mxu0 0.0
  %508 = vmatpush1.msra.mxu0 0.0
  %509 = vmatprep.subr.mxu0 0.0
  %510 = vmatpush1.msra.mxu0 0.0
  %511 = vmatprep.subr.mxu0 0.0
  %512 = vmatpush1.msra.mxu0 0.0
  %513 = vmatprep.subr.mxu0 0.0
  %514 = vmatpush1.msra.mxu0 0.0
  %515 = vmatprep.subr.mxu0 0.0
  %516 = vmatpush1.msra.mxu0 0.0
  %517 = vmatprep.subr.mxu0 0.0
  %518 = vmatpush1.msra.mxu0 0.0
  %519 = vmatprep.subr.mxu0 0.0
  %520 = vmatpush1.msra.mxu0 0.0
  %521 = vmatprep.subr.mxu0 0.0
  %522 = vmatpush1.msra.mxu0 0.0
  %523 = vmatprep.mubr.f32.mxu0 0.0
  %524 = vmatmul.mubr.f32.gmra.mrb[0].mxu0 %v454
  %v525 = vpop.f32.mrb[0].mxu0
  %v526 = vadd.f32 0.0, %v525
  %v527 = vpop.f32.mrb[0].mxu0
  %528 = vmatprep.mubr.f32.mxu0 0.0
  %529 = vmatmul.mubr.f32.gmra.mrb[0].mxu0 %v457
  %v530 = vpop.f32.mrb[0].mxu0
  %v531 = vadd.f32 0.0, %v530
  %v532 = vpop.f32.mrb[0].mxu0
  %533 = vdwg.mxu0
  %534 = vmatprep.subr.mxu0 0.0
  %535 = vmatpush1.msra.mxu0 %v372
  %536 = vmatprep.subr.mxu0 0.0
  %537 = vmatpush1.msra.mxu0 %v373
  %538 = vmatprep.subr.mxu0 0.0
  %539 = vmatpush1.msra.mxu0 %v383
  %540 = vmatprep.subr.mxu0 0.0
  %541 = vmatpush1.msra.mxu0 %v385
  %542 = vmatprep.subr.mxu0 0.0
  %543 = vmatpush1.msra.mxu0 %v395
  %544 = vmatprep.subr.mxu0 0.0
  %545 = vmatpush1.msra.mxu0 %v397
  %546 = vmatprep.subr.mxu0 0.0
  %547 = vmatpush1.msra.mxu0 %v407
  %548 = vmatprep.subr.mxu0 0.0
  %549 = vmatpush1.msra.mxu0 %v409
  %550 = vmatprep.subr.mxu0 0.0
  %551 = vmatpush1.msra.mxu0 %v419
  %552 = vmatprep.subr.mxu0 0.0
  %553 = vmatpush1.msra.mxu0 %v421
  %554 = vmatprep.subr.mxu0 0.0
  %555 = vmatpush1.msra.mxu0 %v431
  %556 = vmatprep.subr.mxu0 0.0
  %557 = vmatpush1.msra.mxu0 %v433
  %558 = vmatprep.subr.mxu0 0.0
  %559 = vmatpush1.msra.mxu0 %v443
  %560 = vmatprep.subr.mxu0 0.0
  %561 = vmatpush1.msra.mxu0 %v445
  %562 = vmatprep.subr.mxu0 0.0
  %563 = vmatpush1.msra.mxu0 0.0
  %564 = vmatprep.subr.mxu0 0.0
  %565 = vmatpush1.msra.mxu0 0.0
  %566 = vmatprep.subr.mxu0 0.0
  %567 = vmatpush1.msra.mxu0 0.0
  %568 = vmatprep.subr.mxu0 0.0
  %569 = vmatpush1.msra.mxu0 0.0
  %570 = vmatprep.subr.mxu0 0.0
  %571 = vmatpush1.msra.mxu0 0.0
  %572 = vmatprep.subr.mxu0 0.0
  %573 = vmatpush1.msra.mxu0 0.0
  %574 = vmatprep.subr.mxu0 0.0
  %575 = vmatpush1.msra.mxu0 0.0
  %576 = vmatprep.subr.mxu0 0.0
  %577 = vmatpush1.msra.mxu0 0.0
  %578 = vmatprep.subr.mxu0 0.0
  %579 = vmatpush1.msra.mxu0 0.0
  %580 = vmatprep.subr.mxu0 0.0
  %581 = vmatpush1.msra.mxu0 0.0
  %582 = vmatprep.subr.mxu0 0.0
  %583 = vmatpush1.msra.mxu0 0.0
  %584 = vmatprep.subr.mxu0 0.0
  %585 = vmatpush1.msra.mxu0 0.0
  %586 = vmatprep.subr.mxu0 0.0
  %587 = vmatpush1.msra.mxu0 0.0
  %588 = vmatprep.subr.mxu0 0.0
  %589 = vmatpush1.msra.mxu0 0.0
  %590 = vmatprep.subr.mxu0 0.0
  %591 = vmatpush1.msra.mxu0 0.0
  %592 = vmatprep.subr.mxu0 0.0
  %593 = vmatpush1.msra.mxu0 0.0
  %594 = vmatprep.subr.mxu0 0.0
  %595 = vmatpush1.msra.mxu0 0.0
  %596 = vmatprep.subr.mxu0 0.0
  %597 = vmatpush1.msra.mxu0 0.0
  %598 = vmatprep.mubr.f32.mxu0 0.0
  %599 = vmatmul.mubr.f32.gmra.mrb[0].mxu0 %v454
  %v600 = vpop.f32.mrb[0].mxu0
  %v601 = vadd.f32 0.0, %v600
  %v602 = vpop.f32.mrb[0].mxu0
  %603 = vmatprep.mubr.f32.mxu0 0.0
  %604 = vmatmul.mubr.f32.gmra.mrb[0].mxu0 %v457
  %v605 = vpop.f32.mrb[0].mxu0
  %v606 = vadd.f32 0.0, %v605
  %v607 = vpop.f32.mrb[0].mxu0
  %608 = vdwg.mxu0
  %v609 = vxor.u32 %v526, 2147483648
  %v610 = vxor.u32 %v531, 2147483648
  %v611 = vxor.u32 %v601, 2147483648
  %v612 = vxor.u32 %v606, 2147483648
  %v613 = vmul.f32 %v609, 1.442695
  %v614 = vpow.pop %v613
  %v615 = vmul.f32 %v610, 1.442695
  %v616 = vpow.pop %v615
  %v617 = vmul.f32 %v611, 1.442695
  %v618 = vpow.pop %v617
  %v619 = vmul.f32 %v612, 1.442695
  %v620 = vpow.pop %v619
  %v621 = vadd.f32 %v614, 1.0
  %v622 = vadd.f32 %v616, 1.0
  %v623 = vadd.f32 %v618, 1.0
  %v624 = vadd.f32 %v620, 1.0
  %v625 = vrcp.pop %v621
  %v626 = vmul.f32 1.0, %v625
  %v627 = vrcp.pop %v622
  %v628 = vmul.f32 1.0, %v627
  %v629 = vrcp.pop %v623
  %v630 = vmul.f32 1.0, %v629
  %v631 = vrcp.pop %v624
  %v632 = vmul.f32 1.0, %v631
  %v633 = vcombine.high %v626, 0.0
  %v635 = vunpack.c.l.s4 1983009808
  %v636 = vunpack.c.0.s8 %v635
  %v637 = vlaneseq
  %v638 = vshrl.u32 %v637, 7
  %v639 = vsub.s32 %v636, %v638
  %v640 = vrot.slane %v626, %v639
  %v642 = vunpack.c.l.s4 1983009808
  %v643 = vunpack.c.0.s8 %v642
  %v644 = vlaneseq
  %v645 = vshrl.u32 %v644, 7
  %v646 = vsub.s32 %v643, %v645
  %v647 = vrot.slane %v633, %v646
  %v648 = vcombine.high %v640, 0.0
  %v650 = vunpack.c.l.s4 1934713408
  %v651 = vunpack.c.0.s8 %v650
  %v652 = vlaneseq
  %v653 = vshrl.u32 %v652, 7
  %v654 = vsub.s32 %v651, %v653
  %v655 = vrot.slane %v640, %v654
  %v657 = vunpack.c.l.s4 1934713408
  %v658 = vunpack.c.0.s8 %v657
  %v659 = vlaneseq
  %v660 = vshrl.u32 %v659, 7
  %v661 = vsub.s32 %v658, %v660
  %v662 = vrot.slane %v648, %v661
  %v663 = vcombine.high %v647, 0.0
  %v665 = vunpack.c.l.s4 1934713408
  %v666 = vunpack.c.0.s8 %v665
  %v667 = vlaneseq
  %v668 = vshrl.u32 %v667, 7
  %v669 = vsub.s32 %v666, %v668
  %v670 = vrot.slane %v647, %v669
  %v672 = vunpack.c.l.s4 1934713408
  %v673 = vunpack.c.0.s8 %v672
  %v674 = vlaneseq
  %v675 = vshrl.u32 %v674, 7
  %v676 = vsub.s32 %v673, %v675
  %v677 = vrot.slane %v663, %v676
  %v678 = vcombine.high %v655, 0.0
  %v679 = vcombine.high %v662, 0.0
  %v680 = vcombine.high %v670, 0.0
  %v681 = vcombine.high %v677, 0.0
  %v682 = vcombine.high %v628, 0.0
  %v684 = vunpack.c.l.s4 1983009808
  %v685 = vunpack.c.0.s8 %v684
  %v686 = vlaneseq
  %v687 = vshrl.u32 %v686, 7
  %v688 = vsub.s32 %v685, %v687
  %v689 = vrot.slane %v628, %v688
  %v691 = vunpack.c.l.s4 1983009808
  %v692 = vunpack.c.0.s8 %v691
  %v693 = vlaneseq
  %v694 = vshrl.u32 %v693, 7
  %v695 = vsub.s32 %v692, %v694
  %v696 = vrot.slane %v682, %v695
  %v697 = vcombine.high %v689, 0.0
  %v699 = vunpack.c.l.s4 1934713408
  %v700 = vunpack.c.0.s8 %v699
  %v701 = vlaneseq
  %v702 = vshrl.u32 %v701, 7
  %v703 = vsub.s32 %v700, %v702
  %v704 = vrot.slane %v689, %v703
  %v706 = vunpack.c.l.s4 1934713408
  %v707 = vunpack.c.0.s8 %v706
  %v708 = vlaneseq
  %v709 = vshrl.u32 %v708, 7
  %v710 = vsub.s32 %v707, %v709
  %v711 = vrot.slane %v697, %v710
  %v712 = vcombine.high %v696, 0.0
  %v714 = vunpack.c.l.s4 1934713408
  %v715 = vunpack.c.0.s8 %v714
  %v716 = vlaneseq
  %v717 = vshrl.u32 %v716, 7
  %v718 = vsub.s32 %v715, %v717
  %v719 = vrot.slane %v696, %v718
  %v721 = vunpack.c.l.s4 1934713408
  %v722 = vunpack.c.0.s8 %v721
  %v723 = vlaneseq
  %v724 = vshrl.u32 %v723, 7
  %v725 = vsub.s32 %v722, %v724
  %v726 = vrot.slane %v712, %v725
  %v727 = vcombine.high %v704, 0.0
  %v728 = vcombine.high %v711, 0.0
  %v729 = vcombine.high %v719, 0.0
  %v730 = vcombine.high %v726, 0.0
  %v731 = vcombine.high %v630, 0.0
  %v733 = vunpack.c.l.s4 1983009808
  %v734 = vunpack.c.0.s8 %v733
  %v735 = vlaneseq
  %v736 = vshrl.u32 %v735, 7
  %v737 = vsub.s32 %v734, %v736
  %v738 = vrot.slane %v630, %v737
  %v740 = vunpack.c.l.s4 1983009808
  %v741 = vunpack.c.0.s8 %v740
  %v742 = vlaneseq
  %v743 = vshrl.u32 %v742, 7
  %v744 = vsub.s32 %v741, %v743
  %v745 = vrot.slane %v731, %v744
  %v746 = vcombine.high %v738, 0.0
  %v748 = vunpack.c.l.s4 1934713408
  %v749 = vunpack.c.0.s8 %v748
  %v750 = vlaneseq
  %v751 = vshrl.u32 %v750, 7
  %v752 = vsub.s32 %v749, %v751
  %v753 = vrot.slane %v738, %v752
  %v755 = vunpack.c.l.s4 1934713408
  %v756 = vunpack.c.0.s8 %v755
  %v757 = vlaneseq
  %v758 = vshrl.u32 %v757, 7
  %v759 = vsub.s32 %v756, %v758
  %v760 = vrot.slane %v746, %v759
  %v761 = vcombine.high %v745, 0.0
  %v763 = vunpack.c.l.s4 1934713408
  %v764 = vunpack.c.0.s8 %v763
  %v765 = vlaneseq
  %v766 = vshrl.u32 %v765, 7
  %v767 = vsub.s32 %v764, %v766
  %v768 = vrot.slane %v745, %v767
  %v770 = vunpack.c.l.s4 1934713408
  %v771 = vunpack.c.0.s8 %v770
  %v772 = vlaneseq
  %v773 = vshrl.u32 %v772, 7
  %v774 = vsub.s32 %v771, %v773
  %v775 = vrot.slane %v761, %v774
  %v776 = vcombine.high %v753, 0.0
  %v777 = vcombine.high %v760, 0.0
  %v778 = vcombine.high %v768, 0.0
  %v779 = vcombine.high %v775, 0.0
  %v780 = vcombine.high %v632, 0.0
  %v782 = vunpack.c.l.s4 1983009808
  %v783 = vunpack.c.0.s8 %v782
  %v784 = vlaneseq
  %v785 = vshrl.u32 %v784, 7
  %v786 = vsub.s32 %v783, %v785
  %v787 = vrot.slane %v632, %v786
  %v789 = vunpack.c.l.s4 1983009808
  %v790 = vunpack.c.0.s8 %v789
  %v791 = vlaneseq
  %v792 = vshrl.u32 %v791, 7
  %v793 = vsub.s32 %v790, %v792
  %v794 = vrot.slane %v780, %v793
  %v795 = vcombine.high %v787, 0.0
  %v797 = vunpack.c.l.s4 1934713408
  %v798 = vunpack.c.0.s8 %v797
  %v799 = vlaneseq
  %v800 = vshrl.u32 %v799, 7
  %v801 = vsub.s32 %v798, %v800
  %v802 = vrot.slane %v787, %v801
  %v804 = vunpack.c.l.s4 1934713408
  %v805 = vunpack.c.0.s8 %v804
  %v806 = vlaneseq
  %v807 = vshrl.u32 %v806, 7
  %v808 = vsub.s32 %v805, %v807
  %v809 = vrot.slane %v795, %v808
  %v810 = vcombine.high %v794, 0.0
  %v812 = vunpack.c.l.s4 1934713408
  %v813 = vunpack.c.0.s8 %v812
  %v814 = vlaneseq
  %v815 = vshrl.u32 %v814, 7
  %v816 = vsub.s32 %v813, %v815
  %v817 = vrot.slane %v794, %v816
  %v819 = vunpack.c.l.s4 1934713408
  %v820 = vunpack.c.0.s8 %v819
  %v821 = vlaneseq
  %v822 = vshrl.u32 %v821, 7
  %v823 = vsub.s32 %v820, %v822
  %v824 = vrot.slane %v810, %v823
  %v825 = vcombine.high %v802, 0.0
  %v826 = vcombine.high %v809, 0.0
  %v827 = vcombine.high %v817, 0.0
  %v828 = vcombine.high %v824, 0.0
  %831 = vrot.lane.b32.xlu0 %v678, 16
  %v832 = vpop.permute.xlu0 %831
  %833 = vrot.lane.b32.xlu0 %v776, 16
  %v834 = vpop.permute.xlu0 %833
  %839 = vrot.lane.b32.xlu0 %v662, 32
  %v840 = vpop.permute.xlu0 %839
  %841 = vrot.lane.b32.xlu0 %v760, 32
  %v842 = vpop.permute.xlu0 %841
  %847 = vrot.lane.b32.xlu0 %v679, 48
  %v848 = vpop.permute.xlu0 %847
  %849 = vrot.lane.b32.xlu0 %v777, 48
  %v850 = vpop.permute.xlu0 %849
  %855 = vrot.lane.b32.xlu0 %v670, 64
  %v856 = vpop.permute.xlu0 %855
  %857 = vrot.lane.b32.xlu0 %v768, 64
  %v858 = vpop.permute.xlu0 %857
  %863 = vrot.lane.b32.xlu0 %v680, 80
  %v864 = vpop.permute.xlu0 %863
  %865 = vrot.lane.b32.xlu0 %v778, 80
  %v866 = vpop.permute.xlu0 %865
  %871 = vrot.lane.b32.xlu0 %v677, 96
  %v872 = vpop.permute.xlu0 %871
  %873 = vrot.lane.b32.xlu0 %v775, 96
  %v874 = vpop.permute.xlu0 %873
  %879 = vrot.lane.b32.xlu0 %v681, 112
  %v880 = vpop.permute.xlu0 %879
  %881 = vrot.lane.b32.xlu0 %v779, 112
  %v882 = vpop.permute.xlu0 %881
  %887 = vrot.lane.b32.xlu0 %v727, 16
  %v888 = vpop.permute.xlu0 %887
  %889 = vrot.lane.b32.xlu0 %v825, 16
  %v890 = vpop.permute.xlu0 %889
  %895 = vrot.lane.b32.xlu0 %v711, 32
  %v896 = vpop.permute.xlu0 %895
  %897 = vrot.lane.b32.xlu0 %v809, 32
  %v898 = vpop.permute.xlu0 %897
  %903 = vrot.lane.b32.xlu0 %v728, 48
  %v904 = vpop.permute.xlu0 %903
  %905 = vrot.lane.b32.xlu0 %v826, 48
  %v906 = vpop.permute.xlu0 %905
  %911 = vrot.lane.b32.xlu0 %v719, 64
  %v912 = vpop.permute.xlu0 %911
  %913 = vrot.lane.b32.xlu0 %v817, 64
  %v914 = vpop.permute.xlu0 %913
  %919 = vrot.lane.b32.xlu0 %v729, 80
  %v920 = vpop.permute.xlu0 %919
  %921 = vrot.lane.b32.xlu0 %v827, 80
  %v922 = vpop.permute.xlu0 %921
  %927 = vrot.lane.b32.xlu0 %v726, 96
  %v928 = vpop.permute.xlu0 %927
  %929 = vrot.lane.b32.xlu0 %v824, 96
  %v930 = vpop.permute.xlu0 %929
  %935 = vrot.lane.b32.xlu0 %v730, 112
  %v936 = vpop.permute.xlu0 %935
  %937 = vrot.lane.b32.xlu0 %v828, 112
  %v938 = vpop.permute.xlu0 %937
  %vm941 = vcmask 130048
  %v942 = vsel %vm941, %v655, %v832
  %v943 = vsel %vm941, %v753, %v834
  %vm944 = vcmask 261120
  %v945 = vsel %vm944, %v942, %v840
  %v946 = vsel %vm944, %v943, %v842
  %vm947 = vcmask 392192
  %v948 = vsel %vm947, %v945, %v848
  %v949 = vsel %vm947, %v946, %v850
  %vm950 = vcmask 523264
  %v951 = vsel %vm950, %v948, %v856
  %v952 = vsel %vm950, %v949, %v858
  %vm953 = vcmask 654336
  %v954 = vsel %vm953, %v951, %v864
  %v955 = vsel %vm953, %v952, %v866
  %vm956 = vcmask 785408
  %v957 = vsel %vm956, %v954, %v872
  %v958 = vsel %vm956, %v955, %v874
  %v959 = vsel %vm452, %v957, %v880
  %v960 = vsel %vm452, %v958, %v882
  %v961 = vsel %vm941, %v704, %v888
  %v962 = vsel %vm941, %v802, %v890
  %v963 = vsel %vm944, %v961, %v896
  %v964 = vsel %vm944, %v962, %v898
  %v965 = vsel %vm947, %v963, %v904
  %v966 = vsel %vm947, %v964, %v906
  %v967 = vsel %vm950, %v965, %v912
  %v968 = vsel %vm950, %v966, %v914
  %v969 = vsel %vm953, %v967, %v920
  %v970 = vsel %vm953, %v968, %v922
  %v971 = vsel %vm956, %v969, %v928
  %v972 = vsel %vm956, %v970, %v930
  %v973 = vsel %vm452, %v971, %v936
  %v974 = vsel %vm452, %v972, %v938
  %v975 = vadd.f32 %v959, 1.0
  %v976 = vadd.f32 %v973, 1.0
  %v977 = vadd.f32 %v960, 1.0
  %v978 = vadd.f32 %v974, 1.0
  %v979 = vlaneseq
  %v980 = vshrl.u32 %v979, 7
  %v981 = vsub.s32 0, %v980
  %v982 = vrot.slane %v975, %v981
  %v983 = vlaneseq
  %v984 = vshrl.u32 %v983, 7
  %v985 = vsub.s32 0, %v984
  %v986 = vrot.slane %v976, %v985
  %v987 = vlaneseq
  %v988 = vshrl.u32 %v987, 7
  %v989 = vsub.s32 0, %v988
  %v990 = vrot.slane %v977, %v989
  %v991 = vlaneseq
  %v992 = vshrl.u32 %v991, 7
  %v993 = vsub.s32 0, %v992
  %v994 = vrot.slane %v978, %v993
  %v995 = vmul.f32 %v39, %v982
  %v996 = vmul.f32 %v40, %v986
  %v997 = vmul.f32 %v41, %v982
  %v998 = vmul.f32 %v42, %v986
  %v999 = vmul.f32 %v43, %v982
  %v1000 = vmul.f32 %v44, %v986
  %v1001 = vmul.f32 %v45, %v982
  %v1002 = vmul.f32 %v46, %v986
  %v1003 = vmul.f32 %v47, %v990
  %v1004 = vmul.f32 %v48, %v994
  %v1005 = vmul.f32 %v49, %v990
  %v1006 = vmul.f32 %v50, %v994
  %v1007 = vmul.f32 %v51, %v990
  %v1008 = vmul.f32 %v52, %v994
  %v1009 = vmul.f32 %v53, %v990
  %v1010 = vmul.f32 %v54, %v994
  %v1011 = vmax.f32 %v995, %v996
  %1012 = vmax.xlane.f32.xlu0 %v1011
  %v1013 = vpop.xlane.xlu0 %1012
  %v1014 = vmax.f32 %v997, %v998
  %1015 = vmax.xlane.f32.xlu0 %v1014
  %v1016 = vpop.xlane.xlu0 %1015
  %v1017 = vmax.f32 %v999, %v1000
  %1018 = vmax.xlane.f32.xlu0 %v1017
  %v1019 = vpop.xlane.xlu0 %1018
  %v1020 = vmax.f32 %v1001, %v1002
  %1021 = vmax.xlane.f32.xlu0 %v1020
  %v1022 = vpop.xlane.xlu0 %1021
  %v1023 = vmax.f32 %v1003, %v1004
  %1024 = vmax.xlane.f32.xlu0 %v1023
  %v1025 = vpop.xlane.xlu0 %1024
  %v1026 = vmax.f32 %v1005, %v1006
  %1027 = vmax.xlane.f32.xlu0 %v1026
  %v1028 = vpop.xlane.xlu0 %1027
  %v1029 = vmax.f32 %v1007, %v1008
  %1030 = vmax.xlane.f32.xlu0 %v1029
  %v1031 = vpop.xlane.xlu0 %1030
  %v1032 = vmax.f32 %v1009, %v1010
  %1033 = vmax.xlane.f32.xlu0 %v1032
  %v1034 = vpop.xlane.xlu0 %1033
  %v1035 = vld [vmem:[%s4] sm:$0x3]
  %v1037 = vlaneseq
  %v1038 = vshrl.u32 %v1037, 7
  %v1039 = vsub.s32 0, %v1038
  %v1040 = vrot.slane %v1035, %v1039
  %1042 = vbcast.lane.b32.xlu0 %v1040, 256
  %v1043 = vpop.permute.xlu0 %1042
  %s1045 = sor.u32 256, 8
  %1046 = vbcast.lane.b32.xlu0 %v1040, %s1045
  %v1047 = vpop.permute.xlu0 %1046
  %s1049 = sor.u32 256, 16
  %1050 = vbcast.lane.b32.xlu0 %v1040, %s1049
  %v1051 = vpop.permute.xlu0 %1050
  %s1053 = sor.u32 256, 24
  %1054 = vbcast.lane.b32.xlu0 %v1040, %s1053
  %v1055 = vpop.permute.xlu0 %1054
  %v1056 = vlaneseq
  %v1057 = vshrl.u32 %v1056, 7
  %v1058 = vsub.s32 1, %v1057
  %v1059 = vrot.slane %v1035, %v1058
  %1061 = vbcast.lane.b32.xlu0 %v1059, 256
  %v1062 = vpop.permute.xlu0 %1061
  %s1064 = sor.u32 256, 8
  %1065 = vbcast.lane.b32.xlu0 %v1059, %s1064
  %v1066 = vpop.permute.xlu0 %1065
  %s1068 = sor.u32 256, 16
  %1069 = vbcast.lane.b32.xlu0 %v1059, %s1068
  %v1070 = vpop.permute.xlu0 %1069
  %s1072 = sor.u32 256, 24
  %1073 = vbcast.lane.b32.xlu0 %v1059, %s1072
  %v1074 = vpop.permute.xlu0 %1073
  %v1083 = vmul.f32 %v1013, %v1043
  %v1084 = vmul.f32 %v1016, %v1047
  %v1085 = vmul.f32 %v1019, %v1051
  %v1086 = vmul.f32 %v1022, %v1055
  %v1087 = vmul.f32 %v1013, %v1062
  %v1088 = vmul.f32 %v1016, %v1066
  %v1089 = vmul.f32 %v1019, %v1070
  %v1090 = vmul.f32 %v1022, %v1074
  %v1091 = vmul.f32 %v1025, %v1043
  %v1092 = vmul.f32 %v1028, %v1047
  %v1093 = vmul.f32 %v1031, %v1051
  %v1094 = vmul.f32 %v1034, %v1055
  %v1095 = vmul.f32 %v1025, %v1062
  %v1096 = vmul.f32 %v1028, %v1066
  %v1097 = vmul.f32 %v1031, %v1070
  %v1098 = vmul.f32 %v1034, %v1074
  %1115 = vset.pattern.permute.xlu0 0
  %1116 = vperm.xlu0 %1115, %v1083
  %v1117 = vpop.permute.xlu0 %1116
  %1118 = vset.pattern.permute.xlu0 0
  %1119 = vperm.xlu0 %1118, %v1084
  %v1120 = vpop.permute.xlu0 %1119
  %1121 = vset.pattern.permute.xlu0 0
  %1122 = vperm.xlu0 %1121, %v1085
  %v1123 = vpop.permute.xlu0 %1122
  %1124 = vset.pattern.permute.xlu0 0
  %1125 = vperm.xlu0 %1124, %v1086
  %v1126 = vpop.permute.xlu0 %1125
  %1127 = vset.pattern.permute.xlu0 0
  %1128 = vperm.xlu0 %1127, %v1087
  %v1129 = vpop.permute.xlu0 %1128
  %1130 = vset.pattern.permute.xlu0 0
  %1131 = vperm.xlu0 %1130, %v1088
  %v1132 = vpop.permute.xlu0 %1131
  %1133 = vset.pattern.permute.xlu0 0
  %1134 = vperm.xlu0 %1133, %v1089
  %v1135 = vpop.permute.xlu0 %1134
  %1136 = vset.pattern.permute.xlu0 0
  %1137 = vperm.xlu0 %1136, %v1090
  %v1138 = vpop.permute.xlu0 %1137
  %1139 = vset.pattern.permute.xlu0 0
  %1140 = vperm.xlu0 %1139, %v1091
  %v1141 = vpop.permute.xlu0 %1140
  %1142 = vset.pattern.permute.xlu0 0
  %1143 = vperm.xlu0 %1142, %v1092
  %v1144 = vpop.permute.xlu0 %1143
  %1145 = vset.pattern.permute.xlu0 0
  %1146 = vperm.xlu0 %1145, %v1093
  %v1147 = vpop.permute.xlu0 %1146
  %1148 = vset.pattern.permute.xlu0 0
  %1149 = vperm.xlu0 %1148, %v1094
  %v1150 = vpop.permute.xlu0 %1149
  %1151 = vset.pattern.permute.xlu0 0
  %1152 = vperm.xlu0 %1151, %v1095
  %v1153 = vpop.permute.xlu0 %1152
  %1154 = vset.pattern.permute.xlu0 0
  %1155 = vperm.xlu0 %1154, %v1096
  %v1156 = vpop.permute.xlu0 %1155
  %1157 = vset.pattern.permute.xlu0 0
  %1158 = vperm.xlu0 %1157, %v1097
  %v1159 = vpop.permute.xlu0 %1158
  %1160 = vset.pattern.permute.xlu0 0
  %1161 = vperm.xlu0 %1160, %v1098
  %v1162 = vpop.permute.xlu0 %1161
  %v1163 = vlaneseq
  %v1164 = vand.u32 %v1163, 127
  %v1165 = vlaneseq
  %v1166 = vshrl.u32 %v1165, 7
  %v1167 = vsub.s32 %v1164, %v1166
  %v1168 = vrot.slane %v1117, %v1167
  %v1169 = vadd.s32 %v1164, 4294967288
  %v1170 = vlaneseq
  %v1171 = vshrl.u32 %v1170, 7
  %v1172 = vsub.s32 %v1169, %v1171
  %v1173 = vrot.slane %v1120, %v1172
  %vm1174 = vcmask 130112
  %v1175 = vsel %vm1174, %v1173, %v1168
  %v1176 = vadd.s32 %v1164, 4294967280
  %v1177 = vlaneseq
  %v1178 = vshrl.u32 %v1177, 7
  %v1179 = vsub.s32 %v1176, %v1178
  %v1180 = vrot.slane %v1123, %v1179
  %vm1181 = vcmask 195712
  %v1182 = vsel %vm1181, %v1180, %v1175
  %v1183 = vadd.s32 %v1164, 4294967272
  %v1184 = vlaneseq
  %v1185 = vshrl.u32 %v1184, 7
  %v1186 = vsub.s32 %v1183, %v1185
  %v1187 = vrot.slane %v1126, %v1186
  %vm1188 = vcmask 261312
  %v1189 = vsel %vm1188, %v1187, %v1182
  %v1190 = vlaneseq
  %v1191 = vshrl.u32 %v1190, 7
  %v1192 = vsub.s32 %v1164, %v1191
  %v1193 = vrot.slane %v1129, %v1192
  %v1194 = vlaneseq
  %v1195 = vshrl.u32 %v1194, 7
  %v1196 = vsub.s32 %v1169, %v1195
  %v1197 = vrot.slane %v1132, %v1196
  %v1198 = vsel %vm1174, %v1197, %v1193
  %v1199 = vlaneseq
  %v1200 = vshrl.u32 %v1199, 7
  %v1201 = vsub.s32 %v1176, %v1200
  %v1202 = vrot.slane %v1135, %v1201
  %v1203 = vsel %vm1181, %v1202, %v1198
  %v1204 = vlaneseq
  %v1205 = vshrl.u32 %v1204, 7
  %v1206 = vsub.s32 %v1183, %v1205
  %v1207 = vrot.slane %v1138, %v1206
  %v1208 = vsel %vm1188, %v1207, %v1203
  %v1209 = vlaneseq
  %v1210 = vshrl.u32 %v1209, 7
  %v1211 = vsub.s32 %v1164, %v1210
  %v1212 = vrot.slane %v1141, %v1211
  %v1213 = vlaneseq
  %v1214 = vshrl.u32 %v1213, 7
  %v1215 = vsub.s32 %v1169, %v1214
  %v1216 = vrot.slane %v1144, %v1215
  %v1217 = vsel %vm1174, %v1216, %v1212
  %v1218 = vlaneseq
  %v1219 = vshrl.u32 %v1218, 7
  %v1220 = vsub.s32 %v1176, %v1219
  %v1221 = vrot.slane %v1147, %v1220
  %v1222 = vsel %vm1181, %v1221, %v1217
  %v1223 = vlaneseq
  %v1224 = vshrl.u32 %v1223, 7
  %v1225 = vsub.s32 %v1183, %v1224
  %v1226 = vrot.slane %v1150, %v1225
  %v1227 = vsel %vm1188, %v1226, %v1222
  %v1228 = vlaneseq
  %v1229 = vshrl.u32 %v1228, 7
  %v1230 = vsub.s32 %v1164, %v1229
  %v1231 = vrot.slane %v1153, %v1230
  %v1232 = vlaneseq
  %v1233 = vshrl.u32 %v1232, 7
  %v1234 = vsub.s32 %v1169, %v1233
  %v1235 = vrot.slane %v1156, %v1234
  %v1236 = vsel %vm1174, %v1235, %v1231
  %v1237 = vlaneseq
  %v1238 = vshrl.u32 %v1237, 7
  %v1239 = vsub.s32 %v1176, %v1238
  %v1240 = vrot.slane %v1159, %v1239
  %v1241 = vsel %vm1181, %v1240, %v1236
  %v1242 = vlaneseq
  %v1243 = vshrl.u32 %v1242, 7
  %v1244 = vsub.s32 %v1183, %v1243
  %v1245 = vrot.slane %v1162, %v1244
  %v1246 = vsel %vm1188, %v1245, %v1241
  %v1247 = vsel %vm200, %v1208, %v1189
  %v1248 = vsel %vm200, %v1246, %v1227
  %vm1251 = vcmask 254976
  %v1252 = vsel %vm1251, %v1247, 0.0
  %1253 = vadd.xlane.f32.xlu0 %v1252
  %v1254 = vpop.xlane.xlu0 %1253
  %v1255 = vsel %vm1251, %v1248, 0.0
  %1256 = vadd.xlane.f32.xlu0 %v1255
  %v1257 = vpop.xlane.xlu0 %1256
  %v1258 = vmax.f32 %v1254, 0.0
  %v1259 = vmax.f32 %v1257, 0.0
  %v1260 = vld [vmem:[%s5] sm:$0xff]
  %v1261 = vld [vmem:[%s5 + $0x8] sm:$0xff]
  %v1262 = vld [vmem:[%s5 + $0x10] sm:$0xff]
  %v1263 = vld [vmem:[%s5 + $0x18] sm:$0xff]
  %v1268 = vlaneseq
  %v1269 = vshrl.u32 %v1268, 7
  %v1270 = vsub.s32 0, %v1269
  %v1271 = vrot.slane %v1260, %v1270
  %1273 = vbcast.lane.b32.xlu0 %v1271, 256
  %v1274 = vpop.permute.xlu0 %1273
  %v1275 = vlaneseq
  %v1276 = vshrl.u32 %v1275, 7
  %v1277 = vsub.s32 1, %v1276
  %v1278 = vrot.slane %v1260, %v1277
  %1280 = vbcast.lane.b32.xlu0 %v1278, 256
  %v1281 = vpop.permute.xlu0 %1280
  %v1282 = vlaneseq
  %v1283 = vshrl.u32 %v1282, 7
  %v1284 = vsub.s32 2, %v1283
  %v1285 = vrot.slane %v1260, %v1284
  %1287 = vbcast.lane.b32.xlu0 %v1285, 256
  %v1288 = vpop.permute.xlu0 %1287
  %v1289 = vlaneseq
  %v1290 = vshrl.u32 %v1289, 7
  %v1291 = vsub.s32 3, %v1290
  %v1292 = vrot.slane %v1260, %v1291
  %1294 = vbcast.lane.b32.xlu0 %v1292, 256
  %v1295 = vpop.permute.xlu0 %1294
  %v1296 = vlaneseq
  %v1297 = vshrl.u32 %v1296, 7
  %v1298 = vsub.s32 4, %v1297
  %v1299 = vrot.slane %v1260, %v1298
  %1301 = vbcast.lane.b32.xlu0 %v1299, 256
  %v1302 = vpop.permute.xlu0 %1301
  %v1303 = vlaneseq
  %v1304 = vshrl.u32 %v1303, 7
  %v1305 = vsub.s32 5, %v1304
  %v1306 = vrot.slane %v1260, %v1305
  %1308 = vbcast.lane.b32.xlu0 %v1306, 256
  %v1309 = vpop.permute.xlu0 %1308
  %v1310 = vlaneseq
  %v1311 = vshrl.u32 %v1310, 7
  %v1312 = vsub.s32 6, %v1311
  %v1313 = vrot.slane %v1260, %v1312
  %1315 = vbcast.lane.b32.xlu0 %v1313, 256
  %v1316 = vpop.permute.xlu0 %1315
  %v1317 = vlaneseq
  %v1318 = vshrl.u32 %v1317, 7
  %v1319 = vsub.s32 7, %v1318
  %v1320 = vrot.slane %v1260, %v1319
  %1322 = vbcast.lane.b32.xlu0 %v1320, 256
  %v1323 = vpop.permute.xlu0 %1322
  %v1324 = vlaneseq
  %v1325 = vshrl.u32 %v1324, 7
  %v1326 = vsub.s32 0, %v1325
  %v1327 = vrot.slane %v1261, %v1326
  %1329 = vbcast.lane.b32.xlu0 %v1327, 256
  %v1330 = vpop.permute.xlu0 %1329
  %v1331 = vlaneseq
  %v1332 = vshrl.u32 %v1331, 7
  %v1333 = vsub.s32 1, %v1332
  %v1334 = vrot.slane %v1261, %v1333
  %1336 = vbcast.lane.b32.xlu0 %v1334, 256
  %v1337 = vpop.permute.xlu0 %1336
  %v1338 = vlaneseq
  %v1339 = vshrl.u32 %v1338, 7
  %v1340 = vsub.s32 2, %v1339
  %v1341 = vrot.slane %v1261, %v1340
  %1343 = vbcast.lane.b32.xlu0 %v1341, 256
  %v1344 = vpop.permute.xlu0 %1343
  %v1345 = vlaneseq
  %v1346 = vshrl.u32 %v1345, 7
  %v1347 = vsub.s32 3, %v1346
  %v1348 = vrot.slane %v1261, %v1347
  %1350 = vbcast.lane.b32.xlu0 %v1348, 256
  %v1351 = vpop.permute.xlu0 %1350
  %v1352 = vlaneseq
  %v1353 = vshrl.u32 %v1352, 7
  %v1354 = vsub.s32 4, %v1353
  %v1355 = vrot.slane %v1261, %v1354
  %1357 = vbcast.lane.b32.xlu0 %v1355, 256
  %v1358 = vpop.permute.xlu0 %1357
  %v1359 = vlaneseq
  %v1360 = vshrl.u32 %v1359, 7
  %v1361 = vsub.s32 5, %v1360
  %v1362 = vrot.slane %v1261, %v1361
  %1364 = vbcast.lane.b32.xlu0 %v1362, 256
  %v1365 = vpop.permute.xlu0 %1364
  %v1366 = vlaneseq
  %v1367 = vshrl.u32 %v1366, 7
  %v1368 = vsub.s32 6, %v1367
  %v1369 = vrot.slane %v1261, %v1368
  %1371 = vbcast.lane.b32.xlu0 %v1369, 256
  %v1372 = vpop.permute.xlu0 %1371
  %v1373 = vlaneseq
  %v1374 = vshrl.u32 %v1373, 7
  %v1375 = vsub.s32 7, %v1374
  %v1376 = vrot.slane %v1261, %v1375
  %1378 = vbcast.lane.b32.xlu0 %v1376, 256
  %v1379 = vpop.permute.xlu0 %1378
  %v1380 = vlaneseq
  %v1381 = vshrl.u32 %v1380, 7
  %v1382 = vsub.s32 0, %v1381
  %v1383 = vrot.slane %v1262, %v1382
  %1385 = vbcast.lane.b32.xlu0 %v1383, 256
  %v1386 = vpop.permute.xlu0 %1385
  %v1387 = vlaneseq
  %v1388 = vshrl.u32 %v1387, 7
  %v1389 = vsub.s32 1, %v1388
  %v1390 = vrot.slane %v1262, %v1389
  %1392 = vbcast.lane.b32.xlu0 %v1390, 256
  %v1393 = vpop.permute.xlu0 %1392
  %v1394 = vlaneseq
  %v1395 = vshrl.u32 %v1394, 7
  %v1396 = vsub.s32 2, %v1395
  %v1397 = vrot.slane %v1262, %v1396
  %1399 = vbcast.lane.b32.xlu0 %v1397, 256
  %v1400 = vpop.permute.xlu0 %1399
  %v1401 = vlaneseq
  %v1402 = vshrl.u32 %v1401, 7
  %v1403 = vsub.s32 3, %v1402
  %v1404 = vrot.slane %v1262, %v1403
  %1406 = vbcast.lane.b32.xlu0 %v1404, 256
  %v1407 = vpop.permute.xlu0 %1406
  %v1408 = vlaneseq
  %v1409 = vshrl.u32 %v1408, 7
  %v1410 = vsub.s32 4, %v1409
  %v1411 = vrot.slane %v1262, %v1410
  %1413 = vbcast.lane.b32.xlu0 %v1411, 256
  %v1414 = vpop.permute.xlu0 %1413
  %v1415 = vlaneseq
  %v1416 = vshrl.u32 %v1415, 7
  %v1417 = vsub.s32 5, %v1416
  %v1418 = vrot.slane %v1262, %v1417
  %1420 = vbcast.lane.b32.xlu0 %v1418, 256
  %v1421 = vpop.permute.xlu0 %1420
  %v1422 = vlaneseq
  %v1423 = vshrl.u32 %v1422, 7
  %v1424 = vsub.s32 6, %v1423
  %v1425 = vrot.slane %v1262, %v1424
  %1427 = vbcast.lane.b32.xlu0 %v1425, 256
  %v1428 = vpop.permute.xlu0 %1427
  %v1429 = vlaneseq
  %v1430 = vshrl.u32 %v1429, 7
  %v1431 = vsub.s32 7, %v1430
  %v1432 = vrot.slane %v1262, %v1431
  %1434 = vbcast.lane.b32.xlu0 %v1432, 256
  %v1435 = vpop.permute.xlu0 %1434
  %v1436 = vlaneseq
  %v1437 = vshrl.u32 %v1436, 7
  %v1438 = vsub.s32 0, %v1437
  %v1439 = vrot.slane %v1263, %v1438
  %1441 = vbcast.lane.b32.xlu0 %v1439, 256
  %v1442 = vpop.permute.xlu0 %1441
  %v1443 = vlaneseq
  %v1444 = vshrl.u32 %v1443, 7
  %v1445 = vsub.s32 1, %v1444
  %v1446 = vrot.slane %v1263, %v1445
  %1448 = vbcast.lane.b32.xlu0 %v1446, 256
  %v1449 = vpop.permute.xlu0 %1448
  %v1450 = vlaneseq
  %v1451 = vshrl.u32 %v1450, 7
  %v1452 = vsub.s32 2, %v1451
  %v1453 = vrot.slane %v1263, %v1452
  %1455 = vbcast.lane.b32.xlu0 %v1453, 256
  %v1456 = vpop.permute.xlu0 %1455
  %v1457 = vlaneseq
  %v1458 = vshrl.u32 %v1457, 7
  %v1459 = vsub.s32 3, %v1458
  %v1460 = vrot.slane %v1263, %v1459
  %1462 = vbcast.lane.b32.xlu0 %v1460, 256
  %v1463 = vpop.permute.xlu0 %1462
  %v1464 = vlaneseq
  %v1465 = vshrl.u32 %v1464, 7
  %v1466 = vsub.s32 4, %v1465
  %v1467 = vrot.slane %v1263, %v1466
  %1469 = vbcast.lane.b32.xlu0 %v1467, 256
  %v1470 = vpop.permute.xlu0 %1469
  %v1471 = vlaneseq
  %v1472 = vshrl.u32 %v1471, 7
  %v1473 = vsub.s32 5, %v1472
  %v1474 = vrot.slane %v1263, %v1473
  %1476 = vbcast.lane.b32.xlu0 %v1474, 256
  %v1477 = vpop.permute.xlu0 %1476
  %v1478 = vlaneseq
  %v1479 = vshrl.u32 %v1478, 7
  %v1480 = vsub.s32 6, %v1479
  %v1481 = vrot.slane %v1263, %v1480
  %1483 = vbcast.lane.b32.xlu0 %v1481, 256
  %v1484 = vpop.permute.xlu0 %1483
  %v1485 = vlaneseq
  %v1486 = vshrl.u32 %v1485, 7
  %v1487 = vsub.s32 7, %v1486
  %v1488 = vrot.slane %v1263, %v1487
  %1490 = vbcast.lane.b32.xlu0 %v1488, 256
  %v1491 = vpop.permute.xlu0 %1490
  %v1524 = vmul.f32 %v1258, %v1274
  %v1525 = vmul.f32 %v1258, %v1281
  %v1526 = vmul.f32 %v1258, %v1288
  %v1527 = vmul.f32 %v1258, %v1295
  %v1528 = vmul.f32 %v1258, %v1302
  %v1529 = vmul.f32 %v1258, %v1309
  %v1530 = vmul.f32 %v1258, %v1316
  %v1531 = vmul.f32 %v1258, %v1323
  %v1532 = vmul.f32 %v1258, %v1330
  %v1533 = vmul.f32 %v1258, %v1337
  %v1534 = vmul.f32 %v1258, %v1344
  %v1535 = vmul.f32 %v1258, %v1351
  %v1536 = vmul.f32 %v1258, %v1358
  %v1537 = vmul.f32 %v1258, %v1365
  %v1538 = vmul.f32 %v1258, %v1372
  %v1539 = vmul.f32 %v1258, %v1379
  %v1540 = vmul.f32 %v1258, %v1386
  %v1541 = vmul.f32 %v1258, %v1393
  %v1542 = vmul.f32 %v1258, %v1400
  %v1543 = vmul.f32 %v1258, %v1407
  %v1544 = vmul.f32 %v1258, %v1414
  %v1545 = vmul.f32 %v1258, %v1421
  %v1546 = vmul.f32 %v1258, %v1428
  %v1547 = vmul.f32 %v1258, %v1435
  %v1548 = vmul.f32 %v1258, %v1442
  %v1549 = vmul.f32 %v1258, %v1449
  %v1550 = vmul.f32 %v1258, %v1456
  %v1551 = vmul.f32 %v1258, %v1463
  %v1552 = vmul.f32 %v1258, %v1470
  %v1553 = vmul.f32 %v1258, %v1477
  %v1554 = vmul.f32 %v1258, %v1484
  %v1555 = vmul.f32 %v1258, %v1491
  %v1556 = vmul.f32 %v1259, %v1274
  %v1557 = vmul.f32 %v1259, %v1281
  %v1558 = vmul.f32 %v1259, %v1288
  %v1559 = vmul.f32 %v1259, %v1295
  %v1560 = vmul.f32 %v1259, %v1302
  %v1561 = vmul.f32 %v1259, %v1309
  %v1562 = vmul.f32 %v1259, %v1316
  %v1563 = vmul.f32 %v1259, %v1323
  %v1564 = vmul.f32 %v1259, %v1330
  %v1565 = vmul.f32 %v1259, %v1337
  %v1566 = vmul.f32 %v1259, %v1344
  %v1567 = vmul.f32 %v1259, %v1351
  %v1568 = vmul.f32 %v1259, %v1358
  %v1569 = vmul.f32 %v1259, %v1365
  %v1570 = vmul.f32 %v1259, %v1372
  %v1571 = vmul.f32 %v1259, %v1379
  %v1572 = vmul.f32 %v1259, %v1386
  %v1573 = vmul.f32 %v1259, %v1393
  %v1574 = vmul.f32 %v1259, %v1400
  %v1575 = vmul.f32 %v1259, %v1407
  %v1576 = vmul.f32 %v1259, %v1414
  %v1577 = vmul.f32 %v1259, %v1421
  %v1578 = vmul.f32 %v1259, %v1428
  %v1579 = vmul.f32 %v1259, %v1435
  %v1580 = vmul.f32 %v1259, %v1442
  %v1581 = vmul.f32 %v1259, %v1449
  %v1582 = vmul.f32 %v1259, %v1456
  %v1583 = vmul.f32 %v1259, %v1463
  %v1584 = vmul.f32 %v1259, %v1470
  %v1585 = vmul.f32 %v1259, %v1477
  %v1586 = vmul.f32 %v1259, %v1484
  %v1587 = vmul.f32 %v1259, %v1491
  %1652 = vset.pattern.permute.xlu0 0
  %1653 = vperm.xlu0 %1652, %v1524
  %v1654 = vpop.permute.xlu0 %1653
  %1655 = vset.pattern.permute.xlu0 0
  %1656 = vperm.xlu0 %1655, %v1525
  %v1657 = vpop.permute.xlu0 %1656
  %1658 = vset.pattern.permute.xlu0 0
  %1659 = vperm.xlu0 %1658, %v1526
  %v1660 = vpop.permute.xlu0 %1659
  %1661 = vset.pattern.permute.xlu0 0
  %1662 = vperm.xlu0 %1661, %v1527
  %v1663 = vpop.permute.xlu0 %1662
  %1664 = vset.pattern.permute.xlu0 0
  %1665 = vperm.xlu0 %1664, %v1528
  %v1666 = vpop.permute.xlu0 %1665
  %1667 = vset.pattern.permute.xlu0 0
  %1668 = vperm.xlu0 %1667, %v1529
  %v1669 = vpop.permute.xlu0 %1668
  %1670 = vset.pattern.permute.xlu0 0
  %1671 = vperm.xlu0 %1670, %v1530
  %v1672 = vpop.permute.xlu0 %1671
  %1673 = vset.pattern.permute.xlu0 0
  %1674 = vperm.xlu0 %1673, %v1531
  %v1675 = vpop.permute.xlu0 %1674
  %1676 = vset.pattern.permute.xlu0 0
  %1677 = vperm.xlu0 %1676, %v1532
  %v1678 = vpop.permute.xlu0 %1677
  %1679 = vset.pattern.permute.xlu0 0
  %1680 = vperm.xlu0 %1679, %v1533
  %v1681 = vpop.permute.xlu0 %1680
  %1682 = vset.pattern.permute.xlu0 0
  %1683 = vperm.xlu0 %1682, %v1534
  %v1684 = vpop.permute.xlu0 %1683
  %1685 = vset.pattern.permute.xlu0 0
  %1686 = vperm.xlu0 %1685, %v1535
  %v1687 = vpop.permute.xlu0 %1686
  %1688 = vset.pattern.permute.xlu0 0
  %1689 = vperm.xlu0 %1688, %v1536
  %v1690 = vpop.permute.xlu0 %1689
  %1691 = vset.pattern.permute.xlu0 0
  %1692 = vperm.xlu0 %1691, %v1537
  %v1693 = vpop.permute.xlu0 %1692
  %1694 = vset.pattern.permute.xlu0 0
  %1695 = vperm.xlu0 %1694, %v1538
  %v1696 = vpop.permute.xlu0 %1695
  %1697 = vset.pattern.permute.xlu0 0
  %1698 = vperm.xlu0 %1697, %v1539
  %v1699 = vpop.permute.xlu0 %1698
  %1700 = vset.pattern.permute.xlu0 0
  %1701 = vperm.xlu0 %1700, %v1540
  %v1702 = vpop.permute.xlu0 %1701
  %1703 = vset.pattern.permute.xlu0 0
  %1704 = vperm.xlu0 %1703, %v1541
  %v1705 = vpop.permute.xlu0 %1704
  %1706 = vset.pattern.permute.xlu0 0
  %1707 = vperm.xlu0 %1706, %v1542
  %v1708 = vpop.permute.xlu0 %1707
  %1709 = vset.pattern.permute.xlu0 0
  %1710 = vperm.xlu0 %1709, %v1543
  %v1711 = vpop.permute.xlu0 %1710
  %1712 = vset.pattern.permute.xlu0 0
  %1713 = vperm.xlu0 %1712, %v1544
  %v1714 = vpop.permute.xlu0 %1713
  %1715 = vset.pattern.permute.xlu0 0
  %1716 = vperm.xlu0 %1715, %v1545
  %v1717 = vpop.permute.xlu0 %1716
  %1718 = vset.pattern.permute.xlu0 0
  %1719 = vperm.xlu0 %1718, %v1546
  %v1720 = vpop.permute.xlu0 %1719
  %1721 = vset.pattern.permute.xlu0 0
  %1722 = vperm.xlu0 %1721, %v1547
  %v1723 = vpop.permute.xlu0 %1722
  %1724 = vset.pattern.permute.xlu0 0
  %1725 = vperm.xlu0 %1724, %v1548
  %v1726 = vpop.permute.xlu0 %1725
  %1727 = vset.pattern.permute.xlu0 0
  %1728 = vperm.xlu0 %1727, %v1549
  %v1729 = vpop.permute.xlu0 %1728
  %1730 = vset.pattern.permute.xlu0 0
  %1731 = vperm.xlu0 %1730, %v1550
  %v1732 = vpop.permute.xlu0 %1731
  %1733 = vset.pattern.permute.xlu0 0
  %1734 = vperm.xlu0 %1733, %v1551
  %v1735 = vpop.permute.xlu0 %1734
  %1736 = vset.pattern.permute.xlu0 0
  %1737 = vperm.xlu0 %1736, %v1552
  %v1738 = vpop.permute.xlu0 %1737
  %1739 = vset.pattern.permute.xlu0 0
  %1740 = vperm.xlu0 %1739, %v1553
  %v1741 = vpop.permute.xlu0 %1740
  %1742 = vset.pattern.permute.xlu0 0
  %1743 = vperm.xlu0 %1742, %v1554
  %v1744 = vpop.permute.xlu0 %1743
  %1745 = vset.pattern.permute.xlu0 0
  %1746 = vperm.xlu0 %1745, %v1555
  %v1747 = vpop.permute.xlu0 %1746
  %1748 = vset.pattern.permute.xlu0 0
  %1749 = vperm.xlu0 %1748, %v1556
  %v1750 = vpop.permute.xlu0 %1749
  %1751 = vset.pattern.permute.xlu0 0
  %1752 = vperm.xlu0 %1751, %v1557
  %v1753 = vpop.permute.xlu0 %1752
  %1754 = vset.pattern.permute.xlu0 0
  %1755 = vperm.xlu0 %1754, %v1558
  %v1756 = vpop.permute.xlu0 %1755
  %1757 = vset.pattern.permute.xlu0 0
  %1758 = vperm.xlu0 %1757, %v1559
  %v1759 = vpop.permute.xlu0 %1758
  %1760 = vset.pattern.permute.xlu0 0
  %1761 = vperm.xlu0 %1760, %v1560
  %v1762 = vpop.permute.xlu0 %1761
  %1763 = vset.pattern.permute.xlu0 0
  %1764 = vperm.xlu0 %1763, %v1561
  %v1765 = vpop.permute.xlu0 %1764
  %1766 = vset.pattern.permute.xlu0 0
  %1767 = vperm.xlu0 %1766, %v1562
  %v1768 = vpop.permute.xlu0 %1767
  %1769 = vset.pattern.permute.xlu0 0
  %1770 = vperm.xlu0 %1769, %v1563
  %v1771 = vpop.permute.xlu0 %1770
  %1772 = vset.pattern.permute.xlu0 0
  %1773 = vperm.xlu0 %1772, %v1564
  %v1774 = vpop.permute.xlu0 %1773
  %1775 = vset.pattern.permute.xlu0 0
  %1776 = vperm.xlu0 %1775, %v1565
  %v1777 = vpop.permute.xlu0 %1776
  %1778 = vset.pattern.permute.xlu0 0
  %1779 = vperm.xlu0 %1778, %v1566
  %v1780 = vpop.permute.xlu0 %1779
  %1781 = vset.pattern.permute.xlu0 0
  %1782 = vperm.xlu0 %1781, %v1567
  %v1783 = vpop.permute.xlu0 %1782
  %1784 = vset.pattern.permute.xlu0 0
  %1785 = vperm.xlu0 %1784, %v1568
  %v1786 = vpop.permute.xlu0 %1785
  %1787 = vset.pattern.permute.xlu0 0
  %1788 = vperm.xlu0 %1787, %v1569
  %v1789 = vpop.permute.xlu0 %1788
  %1790 = vset.pattern.permute.xlu0 0
  %1791 = vperm.xlu0 %1790, %v1570
  %v1792 = vpop.permute.xlu0 %1791
  %1793 = vset.pattern.permute.xlu0 0
  %1794 = vperm.xlu0 %1793, %v1571
  %v1795 = vpop.permute.xlu0 %1794
  %1796 = vset.pattern.permute.xlu0 0
  %1797 = vperm.xlu0 %1796, %v1572
  %v1798 = vpop.permute.xlu0 %1797
  %1799 = vset.pattern.permute.xlu0 0
  %1800 = vperm.xlu0 %1799, %v1573
  %v1801 = vpop.permute.xlu0 %1800
  %1802 = vset.pattern.permute.xlu0 0
  %1803 = vperm.xlu0 %1802, %v1574
  %v1804 = vpop.permute.xlu0 %1803
  %1805 = vset.pattern.permute.xlu0 0
  %1806 = vperm.xlu0 %1805, %v1575
  %v1807 = vpop.permute.xlu0 %1806
  %1808 = vset.pattern.permute.xlu0 0
  %1809 = vperm.xlu0 %1808, %v1576
  %v1810 = vpop.permute.xlu0 %1809
  %1811 = vset.pattern.permute.xlu0 0
  %1812 = vperm.xlu0 %1811, %v1577
  %v1813 = vpop.permute.xlu0 %1812
  %1814 = vset.pattern.permute.xlu0 0
  %1815 = vperm.xlu0 %1814, %v1578
  %v1816 = vpop.permute.xlu0 %1815
  %1817 = vset.pattern.permute.xlu0 0
  %1818 = vperm.xlu0 %1817, %v1579
  %v1819 = vpop.permute.xlu0 %1818
  %1820 = vset.pattern.permute.xlu0 0
  %1821 = vperm.xlu0 %1820, %v1580
  %v1822 = vpop.permute.xlu0 %1821
  %1823 = vset.pattern.permute.xlu0 0
  %1824 = vperm.xlu0 %1823, %v1581
  %v1825 = vpop.permute.xlu0 %1824
  %1826 = vset.pattern.permute.xlu0 0
  %1827 = vperm.xlu0 %1826, %v1582
  %v1828 = vpop.permute.xlu0 %1827
  %1829 = vset.pattern.permute.xlu0 0
  %1830 = vperm.xlu0 %1829, %v1583
  %v1831 = vpop.permute.xlu0 %1830
  %1832 = vset.pattern.permute.xlu0 0
  %1833 = vperm.xlu0 %1832, %v1584
  %v1834 = vpop.permute.xlu0 %1833
  %1835 = vset.pattern.permute.xlu0 0
  %1836 = vperm.xlu0 %1835, %v1585
  %v1837 = vpop.permute.xlu0 %1836
  %1838 = vset.pattern.permute.xlu0 0
  %1839 = vperm.xlu0 %1838, %v1586
  %v1840 = vpop.permute.xlu0 %1839
  %1841 = vset.pattern.permute.xlu0 0
  %1842 = vperm.xlu0 %1841, %v1587
  %v1843 = vpop.permute.xlu0 %1842
  %v1844 = vlaneseq
  %v1845 = vshrl.u32 %v1844, 7
  %v1846 = vsub.s32 %v1164, %v1845
  %v1847 = vrot.slane %v1654, %v1846
  %v1848 = vlaneseq
  %v1849 = vshrl.u32 %v1848, 7
  %v1850 = vsub.s32 %v1164, %v1849
  %v1851 = vrot.slane %v1657, %v1850
  %v1852 = vlaneseq
  %v1853 = vshrl.u32 %v1852, 7
  %v1854 = vsub.s32 %v1164, %v1853
  %v1855 = vrot.slane %v1660, %v1854
  %v1856 = vlaneseq
  %v1857 = vshrl.u32 %v1856, 7
  %v1858 = vsub.s32 %v1164, %v1857
  %v1859 = vrot.slane %v1663, %v1858
  %v1860 = vlaneseq
  %v1861 = vshrl.u32 %v1860, 7
  %v1862 = vsub.s32 %v1164, %v1861
  %v1863 = vrot.slane %v1666, %v1862
  %v1864 = vlaneseq
  %v1865 = vshrl.u32 %v1864, 7
  %v1866 = vsub.s32 %v1164, %v1865
  %v1867 = vrot.slane %v1669, %v1866
  %v1868 = vlaneseq
  %v1869 = vshrl.u32 %v1868, 7
  %v1870 = vsub.s32 %v1164, %v1869
  %v1871 = vrot.slane %v1672, %v1870
  %v1872 = vlaneseq
  %v1873 = vshrl.u32 %v1872, 7
  %v1874 = vsub.s32 %v1164, %v1873
  %v1875 = vrot.slane %v1675, %v1874
  %v1876 = vlaneseq
  %v1877 = vshrl.u32 %v1876, 7
  %v1878 = vsub.s32 %v1164, %v1877
  %v1879 = vrot.slane %v1678, %v1878
  %v1880 = vlaneseq
  %v1881 = vshrl.u32 %v1880, 7
  %v1882 = vsub.s32 %v1164, %v1881
  %v1883 = vrot.slane %v1681, %v1882
  %v1884 = vlaneseq
  %v1885 = vshrl.u32 %v1884, 7
  %v1886 = vsub.s32 %v1164, %v1885
  %v1887 = vrot.slane %v1684, %v1886
  %v1888 = vlaneseq
  %v1889 = vshrl.u32 %v1888, 7
  %v1890 = vsub.s32 %v1164, %v1889
  %v1891 = vrot.slane %v1687, %v1890
  %v1892 = vlaneseq
  %v1893 = vshrl.u32 %v1892, 7
  %v1894 = vsub.s32 %v1164, %v1893
  %v1895 = vrot.slane %v1690, %v1894
  %v1896 = vlaneseq
  %v1897 = vshrl.u32 %v1896, 7
  %v1898 = vsub.s32 %v1164, %v1897
  %v1899 = vrot.slane %v1693, %v1898
  %v1900 = vlaneseq
  %v1901 = vshrl.u32 %v1900, 7
  %v1902 = vsub.s32 %v1164, %v1901
  %v1903 = vrot.slane %v1696, %v1902
  %v1904 = vlaneseq
  %v1905 = vshrl.u32 %v1904, 7
  %v1906 = vsub.s32 %v1164, %v1905
  %v1907 = vrot.slane %v1699, %v1906
  %v1908 = vlaneseq
  %v1909 = vshrl.u32 %v1908, 7
  %v1910 = vsub.s32 %v1164, %v1909
  %v1911 = vrot.slane %v1702, %v1910
  %v1912 = vlaneseq
  %v1913 = vshrl.u32 %v1912, 7
  %v1914 = vsub.s32 %v1164, %v1913
  %v1915 = vrot.slane %v1705, %v1914
  %v1916 = vlaneseq
  %v1917 = vshrl.u32 %v1916, 7
  %v1918 = vsub.s32 %v1164, %v1917
  %v1919 = vrot.slane %v1708, %v1918
  %v1920 = vlaneseq
  %v1921 = vshrl.u32 %v1920, 7
  %v1922 = vsub.s32 %v1164, %v1921
  %v1923 = vrot.slane %v1711, %v1922
  %v1924 = vlaneseq
  %v1925 = vshrl.u32 %v1924, 7
  %v1926 = vsub.s32 %v1164, %v1925
  %v1927 = vrot.slane %v1714, %v1926
  %v1928 = vlaneseq
  %v1929 = vshrl.u32 %v1928, 7
  %v1930 = vsub.s32 %v1164, %v1929
  %v1931 = vrot.slane %v1717, %v1930
  %v1932 = vlaneseq
  %v1933 = vshrl.u32 %v1932, 7
  %v1934 = vsub.s32 %v1164, %v1933
  %v1935 = vrot.slane %v1720, %v1934
  %v1936 = vlaneseq
  %v1937 = vshrl.u32 %v1936, 7
  %v1938 = vsub.s32 %v1164, %v1937
  %v1939 = vrot.slane %v1723, %v1938
  %v1940 = vlaneseq
  %v1941 = vshrl.u32 %v1940, 7
  %v1942 = vsub.s32 %v1164, %v1941
  %v1943 = vrot.slane %v1726, %v1942
  %v1944 = vlaneseq
  %v1945 = vshrl.u32 %v1944, 7
  %v1946 = vsub.s32 %v1164, %v1945
  %v1947 = vrot.slane %v1729, %v1946
  %v1948 = vlaneseq
  %v1949 = vshrl.u32 %v1948, 7
  %v1950 = vsub.s32 %v1164, %v1949
  %v1951 = vrot.slane %v1732, %v1950
  %v1952 = vlaneseq
  %v1953 = vshrl.u32 %v1952, 7
  %v1954 = vsub.s32 %v1164, %v1953
  %v1955 = vrot.slane %v1735, %v1954
  %v1956 = vlaneseq
  %v1957 = vshrl.u32 %v1956, 7
  %v1958 = vsub.s32 %v1164, %v1957
  %v1959 = vrot.slane %v1738, %v1958
  %v1960 = vlaneseq
  %v1961 = vshrl.u32 %v1960, 7
  %v1962 = vsub.s32 %v1164, %v1961
  %v1963 = vrot.slane %v1741, %v1962
  %v1964 = vlaneseq
  %v1965 = vshrl.u32 %v1964, 7
  %v1966 = vsub.s32 %v1164, %v1965
  %v1967 = vrot.slane %v1744, %v1966
  %v1968 = vlaneseq
  %v1969 = vshrl.u32 %v1968, 7
  %v1970 = vsub.s32 %v1164, %v1969
  %v1971 = vrot.slane %v1747, %v1970
  %v1972 = vlaneseq
  %v1973 = vshrl.u32 %v1972, 7
  %v1974 = vsub.s32 %v1164, %v1973
  %v1975 = vrot.slane %v1750, %v1974
  %v1976 = vlaneseq
  %v1977 = vshrl.u32 %v1976, 7
  %v1978 = vsub.s32 %v1164, %v1977
  %v1979 = vrot.slane %v1753, %v1978
  %v1980 = vlaneseq
  %v1981 = vshrl.u32 %v1980, 7
  %v1982 = vsub.s32 %v1164, %v1981
  %v1983 = vrot.slane %v1756, %v1982
  %v1984 = vlaneseq
  %v1985 = vshrl.u32 %v1984, 7
  %v1986 = vsub.s32 %v1164, %v1985
  %v1987 = vrot.slane %v1759, %v1986
  %v1988 = vlaneseq
  %v1989 = vshrl.u32 %v1988, 7
  %v1990 = vsub.s32 %v1164, %v1989
  %v1991 = vrot.slane %v1762, %v1990
  %v1992 = vlaneseq
  %v1993 = vshrl.u32 %v1992, 7
  %v1994 = vsub.s32 %v1164, %v1993
  %v1995 = vrot.slane %v1765, %v1994
  %v1996 = vlaneseq
  %v1997 = vshrl.u32 %v1996, 7
  %v1998 = vsub.s32 %v1164, %v1997
  %v1999 = vrot.slane %v1768, %v1998
  %v2000 = vlaneseq
  %v2001 = vshrl.u32 %v2000, 7
  %v2002 = vsub.s32 %v1164, %v2001
  %v2003 = vrot.slane %v1771, %v2002
  %v2004 = vlaneseq
  %v2005 = vshrl.u32 %v2004, 7
  %v2006 = vsub.s32 %v1164, %v2005
  %v2007 = vrot.slane %v1774, %v2006
  %v2008 = vlaneseq
  %v2009 = vshrl.u32 %v2008, 7
  %v2010 = vsub.s32 %v1164, %v2009
  %v2011 = vrot.slane %v1777, %v2010
  %v2012 = vlaneseq
  %v2013 = vshrl.u32 %v2012, 7
  %v2014 = vsub.s32 %v1164, %v2013
  %v2015 = vrot.slane %v1780, %v2014
  %v2016 = vlaneseq
  %v2017 = vshrl.u32 %v2016, 7
  %v2018 = vsub.s32 %v1164, %v2017
  %v2019 = vrot.slane %v1783, %v2018
  %v2020 = vlaneseq
  %v2021 = vshrl.u32 %v2020, 7
  %v2022 = vsub.s32 %v1164, %v2021
  %v2023 = vrot.slane %v1786, %v2022
  %v2024 = vlaneseq
  %v2025 = vshrl.u32 %v2024, 7
  %v2026 = vsub.s32 %v1164, %v2025
  %v2027 = vrot.slane %v1789, %v2026
  %v2028 = vlaneseq
  %v2029 = vshrl.u32 %v2028, 7
  %v2030 = vsub.s32 %v1164, %v2029
  %v2031 = vrot.slane %v1792, %v2030
  %v2032 = vlaneseq
  %v2033 = vshrl.u32 %v2032, 7
  %v2034 = vsub.s32 %v1164, %v2033
  %v2035 = vrot.slane %v1795, %v2034
  %v2036 = vlaneseq
  %v2037 = vshrl.u32 %v2036, 7
  %v2038 = vsub.s32 %v1164, %v2037
  %v2039 = vrot.slane %v1798, %v2038
  %v2040 = vlaneseq
  %v2041 = vshrl.u32 %v2040, 7
  %v2042 = vsub.s32 %v1164, %v2041
  %v2043 = vrot.slane %v1801, %v2042
  %v2044 = vlaneseq
  %v2045 = vshrl.u32 %v2044, 7
  %v2046 = vsub.s32 %v1164, %v2045
  %v2047 = vrot.slane %v1804, %v2046
  %v2048 = vlaneseq
  %v2049 = vshrl.u32 %v2048, 7
  %v2050 = vsub.s32 %v1164, %v2049
  %v2051 = vrot.slane %v1807, %v2050
  %v2052 = vlaneseq
  %v2053 = vshrl.u32 %v2052, 7
  %v2054 = vsub.s32 %v1164, %v2053
  %v2055 = vrot.slane %v1810, %v2054
  %v2056 = vlaneseq
  %v2057 = vshrl.u32 %v2056, 7
  %v2058 = vsub.s32 %v1164, %v2057
  %v2059 = vrot.slane %v1813, %v2058
  %v2060 = vlaneseq
  %v2061 = vshrl.u32 %v2060, 7
  %v2062 = vsub.s32 %v1164, %v2061
  %v2063 = vrot.slane %v1816, %v2062
  %v2064 = vlaneseq
  %v2065 = vshrl.u32 %v2064, 7
  %v2066 = vsub.s32 %v1164, %v2065
  %v2067 = vrot.slane %v1819, %v2066
  %v2068 = vlaneseq
  %v2069 = vshrl.u32 %v2068, 7
  %v2070 = vsub.s32 %v1164, %v2069
  %v2071 = vrot.slane %v1822, %v2070
  %v2072 = vlaneseq
  %v2073 = vshrl.u32 %v2072, 7
  %v2074 = vsub.s32 %v1164, %v2073
  %v2075 = vrot.slane %v1825, %v2074
  %v2076 = vlaneseq
  %v2077 = vshrl.u32 %v2076, 7
  %v2078 = vsub.s32 %v1164, %v2077
  %v2079 = vrot.slane %v1828, %v2078
  %v2080 = vlaneseq
  %v2081 = vshrl.u32 %v2080, 7
  %v2082 = vsub.s32 %v1164, %v2081
  %v2083 = vrot.slane %v1831, %v2082
  %v2084 = vlaneseq
  %v2085 = vshrl.u32 %v2084, 7
  %v2086 = vsub.s32 %v1164, %v2085
  %v2087 = vrot.slane %v1834, %v2086
  %v2088 = vlaneseq
  %v2089 = vshrl.u32 %v2088, 7
  %v2090 = vsub.s32 %v1164, %v2089
  %v2091 = vrot.slane %v1837, %v2090
  %v2092 = vlaneseq
  %v2093 = vshrl.u32 %v2092, 7
  %v2094 = vsub.s32 %v1164, %v2093
  %v2095 = vrot.slane %v1840, %v2094
  %v2096 = vlaneseq
  %v2097 = vshrl.u32 %v2096, 7
  %v2098 = vsub.s32 %v1164, %v2097
  %v2099 = vrot.slane %v1843, %v2098
  %v2100 = vsel %vm200, %v1851, %v1847
  %vm2101 = vcmask 1042434
  %v2102 = vsel %vm2101, %v1855, %v2100
  %vm2103 = vcmask 1043459
  %v2104 = vsel %vm2103, %v1859, %v2102
  %vm2105 = vcmask 1044484
  %v2106 = vsel %vm2105, %v1863, %v2104
  %vm2107 = vcmask 1045509
  %v2108 = vsel %vm2107, %v1867, %v2106
  %vm2109 = vcmask 1046534
  %v2110 = vsel %vm2109, %v1871, %v2108
  %vm2111 = vcmask 1047559
  %v2112 = vsel %vm2111, %v1875, %v2110
  %v2113 = vsel %vm200, %v1883, %v1879
  %v2114 = vsel %vm2101, %v1887, %v2113
  %v2115 = vsel %vm2103, %v1891, %v2114
  %v2116 = vsel %vm2105, %v1895, %v2115
  %v2117 = vsel %vm2107, %v1899, %v2116
  %v2118 = vsel %vm2109, %v1903, %v2117
  %v2119 = vsel %vm2111, %v1907, %v2118
  %v2120 = vsel %vm200, %v1915, %v1911
  %v2121 = vsel %vm2101, %v1919, %v2120
  %v2122 = vsel %vm2103, %v1923, %v2121
  %v2123 = vsel %vm2105, %v1927, %v2122
  %v2124 = vsel %vm2107, %v1931, %v2123
  %v2125 = vsel %vm2109, %v1935, %v2124
  %v2126 = vsel %vm2111, %v1939, %v2125
  %v2127 = vsel %vm200, %v1947, %v1943
  %v2128 = vsel %vm2101, %v1951, %v2127
  %v2129 = vsel %vm2103, %v1955, %v2128
  %v2130 = vsel %vm2105, %v1959, %v2129
  %v2131 = vsel %vm2107, %v1963, %v2130
  %v2132 = vsel %vm2109, %v1967, %v2131
  %v2133 = vsel %vm2111, %v1971, %v2132
  %v2134 = vsel %vm200, %v1979, %v1975
  %v2135 = vsel %vm2101, %v1983, %v2134
  %v2136 = vsel %vm2103, %v1987, %v2135
  %v2137 = vsel %vm2105, %v1991, %v2136
  %v2138 = vsel %vm2107, %v1995, %v2137
  %v2139 = vsel %vm2109, %v1999, %v2138
  %v2140 = vsel %vm2111, %v2003, %v2139
  %v2141 = vsel %vm200, %v2011, %v2007
  %v2142 = vsel %vm2101, %v2015, %v2141
  %v2143 = vsel %vm2103, %v2019, %v2142
  %v2144 = vsel %vm2105, %v2023, %v2143
  %v2145 = vsel %vm2107, %v2027, %v2144
  %v2146 = vsel %vm2109, %v2031, %v2145
  %v2147 = vsel %vm2111, %v2035, %v2146
  %v2148 = vsel %vm200, %v2043, %v2039
  %v2149 = vsel %vm2101, %v2047, %v2148
  %v2150 = vsel %vm2103, %v2051, %v2149
  %v2151 = vsel %vm2105, %v2055, %v2150
  %v2152 = vsel %vm2107, %v2059, %v2151
  %v2153 = vsel %vm2109, %v2063, %v2152
  %v2154 = vsel %vm2111, %v2067, %v2153
  %v2155 = vsel %vm200, %v2075, %v2071
  %v2156 = vsel %vm2101, %v2079, %v2155
  %v2157 = vsel %vm2103, %v2083, %v2156
  %v2158 = vsel %vm2105, %v2087, %v2157
  %v2159 = vsel %vm2107, %v2091, %v2158
  %v2160 = vsel %vm2109, %v2095, %v2159
  %v2161 = vsel %vm2111, %v2099, %v2160
  %vm2170 = vcmask 15360
  %v2171 = vsel %vm2170, %v2112, 0.0
  %2172 = vadd.xlane.f32.xlu0 %v2171
  %v2173 = vpop.xlane.xlu0 %2172
  %v2174 = vsel %vm2170, %v2119, 0.0
  %2175 = vadd.xlane.f32.xlu0 %v2174
  %v2176 = vpop.xlane.xlu0 %2175
  %v2177 = vsel %vm2170, %v2126, 0.0
  %2178 = vadd.xlane.f32.xlu0 %v2177
  %v2179 = vpop.xlane.xlu0 %2178
  %v2180 = vsel %vm2170, %v2133, 0.0
  %2181 = vadd.xlane.f32.xlu0 %v2180
  %v2182 = vpop.xlane.xlu0 %2181
  %v2183 = vsel %vm2170, %v2140, 0.0
  %2184 = vadd.xlane.f32.xlu0 %v2183
  %v2185 = vpop.xlane.xlu0 %2184
  %v2186 = vsel %vm2170, %v2147, 0.0
  %2187 = vadd.xlane.f32.xlu0 %v2186
  %v2188 = vpop.xlane.xlu0 %2187
  %v2189 = vsel %vm2170, %v2154, 0.0
  %2190 = vadd.xlane.f32.xlu0 %v2189
  %v2191 = vpop.xlane.xlu0 %2190
  %v2192 = vsel %vm2170, %v2161, 0.0
  %2193 = vadd.xlane.f32.xlu0 %v2192
  %v2194 = vpop.xlane.xlu0 %2193
  %v2195 = vxor.u32 %v2173, 2147483648
  %v2196 = vxor.u32 %v2176, 2147483648
  %v2197 = vxor.u32 %v2179, 2147483648
  %v2198 = vxor.u32 %v2182, 2147483648
  %v2199 = vxor.u32 %v2185, 2147483648
  %v2200 = vxor.u32 %v2188, 2147483648
  %v2201 = vxor.u32 %v2191, 2147483648
  %v2202 = vxor.u32 %v2194, 2147483648
  %v2203 = vmul.f32 %v2195, 1.442695
  %v2204 = vpow.pop %v2203
  %v2205 = vmul.f32 %v2196, 1.442695
  %v2206 = vpow.pop %v2205
  %v2207 = vmul.f32 %v2197, 1.442695
  %v2208 = vpow.pop %v2207
  %v2209 = vmul.f32 %v2198, 1.442695
  %v2210 = vpow.pop %v2209
  %v2211 = vmul.f32 %v2199, 1.442695
  %v2212 = vpow.pop %v2211
  %v2213 = vmul.f32 %v2200, 1.442695
  %v2214 = vpow.pop %v2213
  %v2215 = vmul.f32 %v2201, 1.442695
  %v2216 = vpow.pop %v2215
  %v2217 = vmul.f32 %v2202, 1.442695
  %v2218 = vpow.pop %v2217
  %v2219 = vadd.f32 %v2204, 1.0
  %v2220 = vadd.f32 %v2206, 1.0
  %v2221 = vadd.f32 %v2208, 1.0
  %v2222 = vadd.f32 %v2210, 1.0
  %v2223 = vadd.f32 %v2212, 1.0
  %v2224 = vadd.f32 %v2214, 1.0
  %v2225 = vadd.f32 %v2216, 1.0
  %v2226 = vadd.f32 %v2218, 1.0
  %v2227 = vrcp.pop %v2219
  %v2228 = vmul.f32 1.0, %v2227
  %v2229 = vrcp.pop %v2220
  %v2230 = vmul.f32 1.0, %v2229
  %v2231 = vrcp.pop %v2221
  %v2232 = vmul.f32 1.0, %v2231
  %v2233 = vrcp.pop %v2222
  %v2234 = vmul.f32 1.0, %v2233
  %v2235 = vrcp.pop %v2223
  %v2236 = vmul.f32 1.0, %v2235
  %v2237 = vrcp.pop %v2224
  %v2238 = vmul.f32 1.0, %v2237
  %v2239 = vrcp.pop %v2225
  %v2240 = vmul.f32 1.0, %v2239
  %v2241 = vrcp.pop %v2226
  %v2242 = vmul.f32 1.0, %v2241
  %v2243 = vmul.f32 %v39, %v2228
  %v2244 = vmul.f32 %v40, %v2228
  %v2245 = vmul.f32 %v41, %v2230
  %v2246 = vmul.f32 %v42, %v2230
  %v2247 = vmul.f32 %v43, %v2232
  %v2248 = vmul.f32 %v44, %v2232
  %v2249 = vmul.f32 %v45, %v2234
  %v2250 = vmul.f32 %v46, %v2234
  %v2251 = vmul.f32 %v47, %v2236
  %v2252 = vmul.f32 %v48, %v2236
  %v2253 = vmul.f32 %v49, %v2238
  %v2254 = vmul.f32 %v50, %v2238
  %v2255 = vmul.f32 %v51, %v2240
  %v2256 = vmul.f32 %v52, %v2240
  %v2257 = vmul.f32 %v53, %v2242
  %v2258 = vmul.f32 %v54, %v2242
  %2259 = vst [vmem:[%s6] sm:$0xff] %v2243
  %2260 = vst [vmem:[%s6 + $0x8] sm:$0xff] %v2244
  %2261 = vst [vmem:[%s6 + $0x10] sm:$0xff] %v2245
  %2262 = vst [vmem:[%s6 + $0x18] sm:$0xff] %v2246
  %2263 = vst [vmem:[%s6 + $0x20] sm:$0xff] %v2247
  %2264 = vst [vmem:[%s6 + $0x28] sm:$0xff] %v2248
  %2265 = vst [vmem:[%s6 + $0x30] sm:$0xff] %v2249
  %2266 = vst [vmem:[%s6 + $0x38] sm:$0xff] %v2250
  %2267 = vst [vmem:[%s6 + $0x40] sm:$0xff] %v2251
  %2268 = vst [vmem:[%s6 + $0x48] sm:$0xff] %v2252
  %2269 = vst [vmem:[%s6 + $0x50] sm:$0xff] %v2253
  %2270 = vst [vmem:[%s6 + $0x58] sm:$0xff] %v2254
  %2271 = vst [vmem:[%s6 + $0x60] sm:$0xff] %v2255
  %2272 = vst [vmem:[%s6 + $0x68] sm:$0xff] %v2256
  %2273 = vst [vmem:[%s6 + $0x70] sm:$0xff] %v2257
  %2274 = vst [vmem:[%s6 + $0x78] sm:$0xff] %v2258
  // Predicated region
  $region26: #{efem.1} parent=0 // pred_check
    _
  $region27: #{efem.1} parent=0 // pred_check_branch
    %2276 = sbr.rel (0) target = $region29
  $region28: #{efem.1} parent=0 // pred_region
    _
  $region29: #{efem.1} parent=0 // pred_fallthru
    _
  // Predicated region
  $region30: #{efem.1} parent=0 // pred_check
    _
  $region31: #{efem.1} parent=0 // pred_check_branch
    %2278 = sbr.rel (0) target = $region33
  $region32: #{efem.1} parent=0 // pred_region
    _
  $region33: #{efem.1} parent=0 // pred_fallthru
    _

</llo_original>
